<compile_context>
chip_gen: v7x
topology: tpu7x:2x2x1
jax: 0.10.0
libtpu: 0.0.40
codegen_flags: <defaults>
</compile_context>

<pallas_src>
import functools
import math

import jax
import jax.numpy as jnp
from jax.experimental import pallas as pl
from jax.experimental.pallas import tpu as pltpu


def _round_up(n, m):
    return (n + m - 1) // m * m


def _pitch_kernel(beta, eps, n_filter, inv_step, vocab, with_buckets,
                  x_ref, mf_ref, ml_ref,
                  w1_ref, b1_ref, g1_ref, be1_ref,
                  w2_ref, b2_ref, g2_ref, be2_ref,
                  wl_ref, bl_ref, tab_ref,
                  *refs):
    if with_buckets:
        emb_ref, pitch_ref, bkt_ref, pad_ref = refs
    else:
        emb_ref, pitch_ref, pad_ref = refs
        bkt_ref = None

    x = x_ref[...]                           # (R, Dp) bf16 — BB whole utterances
    rows = x.shape[0]
    m_first = mf_ref[...]                    # (R, 1) f32: 0.0 where t == 0
    m_last = ml_ref[...]                     # (R, 1) f32: 0.0 where t == T-1
    c_max = pad_ref.shape[1]
    f_pad = g1_ref.shape[1]
    inv_n = 1.0 / n_filter

    # Zero only the apron rows the shifted loads can touch.  Re-done every
    # step (2 aligned vreg-column stores): the grid axis is "parallel", so a
    # program_id==0 gate would leave the second core's scratch uninitialized.
    zeros8 = jnp.zeros((8, c_max), jnp.float32)
    pad_ref[pl.ds(0, 8), :] = zeros8
    pad_ref[pl.ds(rows + 8, 8), :] = zeros8

    # Channel-validity mask for LayerNorm's two-pass variance: padded lanes
    # must not contribute (0 - mu)^2 terms.
    ch_mask = jax.lax.broadcasted_iota(jnp.int32, (rows, f_pad), 1) < n_filter

    def conv3(h, w_ref, b_ref):
        # Conv1d(kernel=3, padding=1) over time as three accumulating K=C MXU
        # dots.  Shifted operands: one aligned store + two sublane-shifted
        # loads of the persistent scratch (no jnp.concatenate copy).  The
        # Conv1d zero padding at utterance boundaries is re-applied to the
        # matmul outputs via the per-row masks (row-wise matmul => identical).
        c = h.shape[1]
        h_bf = h if h.dtype == jnp.bfloat16 else h.astype(jnp.bfloat16)
        pad_ref[pl.ds(8, rows), pl.ds(0, c)] = h.astype(jnp.float32)
        h_m1 = pad_ref[pl.ds(7, rows), pl.ds(0, c)].astype(jnp.bfloat16)   # h[t-1]
        h_p1 = pad_ref[pl.ds(9, rows), pl.ds(0, c)].astype(jnp.bfloat16)   # h[t+1]
        y = jnp.dot(h_bf, w_ref[pl.ds(c, c), :],
                    preferred_element_type=jnp.float32)
        y += m_first * jnp.dot(h_m1, w_ref[pl.ds(0, c), :],
                               preferred_element_type=jnp.float32)
        y += m_last * jnp.dot(h_p1, w_ref[pl.ds(2 * c, c), :],
                              preferred_element_type=jnp.float32)
        return y + b_ref[...]

    def layer_norm(h, g_ref, b_ref):
        # Two-pass (x - mu)^2 variance.  Padded channels of h are exactly
        # zero, so the sum over the padded width equals the true sum; the
        # padded lanes are masked out of the variance accumulation.
        mu = jnp.sum(h, axis=-1, keepdims=True) * inv_n
        d = jnp.where(ch_mask, h - mu, 0.0)
        var = jnp.sum(d * d, axis=-1, keepdims=True) * inv_n
        return d * jax.lax.rsqrt(var + eps) * g_ref[...] + b_ref[...]

    # BasePredictor pipeline (Dropout == identity at inference).
    h = layer_norm(jnp.maximum(conv3(x, w1_ref, b1_ref), 0.0), g1_ref, be1_ref)
    h = layer_norm(jnp.maximum(conv3(h, w2_ref, b2_ref), 0.0), g2_ref, be2_ref)

    # Linear(F, 1) as a VPU multiply + lane reduction (avoid an N=1 MXU matmul).
    raw = jnp.sum(h * wl_ref[...], axis=-1, keepdims=True) + bl_ref[...]   # (R, 1)

    # Inference branch of PitchPredictor.forward (target=None).
    pitch = jnp.exp(raw) * beta
    # torch.bucketize(log1p(pitch), linspace(0, log1p(max_pitch), V)) has a
    # closed form for a uniform grid: count(boundary < v) = ceil(v / step).
    # Clipped to V-1 so out-of-range pitch maps to the last embedding row
    # (nn.Embedding would otherwise index out of bounds).
    buckets = jnp.clip(jnp.ceil(jnp.log1p(pitch) * inv_step),
                       0.0, float(vocab - 1)).astype(jnp.int32)            # (R, 1)

    # Embedding lookup as a one-hot matmul on the MXU (f32 so the gathered
    # rows match the table exactly).  Watch item: switch to a DMA row gather
    # if vocab grows well past ~1024.
    col = jax.lax.broadcasted_iota(jnp.int32, (rows, vocab), 1)
    onehot = (col == buckets).astype(jnp.float32)                          # (R, V)
    emb_ref[...] = jnp.dot(onehot, tab_ref[...],
                           preferred_element_type=jnp.float32)             # (R, Dp)
    pitch_ref[...] = pitch
    if bkt_ref is not None:
        bkt_ref[...] = buckets


def _pack_params(p, Dp, Fp):
    """Pad params to lane-aligned widths; stack the 3 conv taps per layer."""
    def pad_mat(a, r, c):
        a = jnp.asarray(a, jnp.float32)
        return jnp.pad(a, ((0, r - a.shape[0]), (0, c - a.shape[1])))

    def pad_row(v, c):
        v = jnp.asarray(v, jnp.float32).reshape(1, -1)
        return jnp.pad(v, ((0, 0), (0, c - v.shape[1])))

    w1 = p["w1"]   # (3, D, F): tap k multiplies x[t - 1 + k]
    w2 = p["w2"]   # (3, F, F)
    w1c = jnp.concatenate([pad_mat(w1[k], Dp, Fp) for k in range(3)], axis=0)
    w2c = jnp.concatenate([pad_mat(w2[k], Fp, Fp) for k in range(3)], axis=0)
    table = jnp.asarray(p["table"], jnp.float32)
    return dict(
        w1c=w1c.astype(jnp.bfloat16),            # (3*Dp, Fp) stacked conv1 taps
        b1=pad_row(p["b1"], Fp), g1=pad_row(p["g1"], Fp), be1=pad_row(p["be1"], Fp),
        w2c=w2c.astype(jnp.bfloat16),            # (3*Fp, Fp) stacked conv2 taps
        b2=pad_row(p["b2"], Fp), g2=pad_row(p["g2"], Fp), be2=pad_row(p["be2"], Fp),
        wl=pad_row(p["wl"], Fp),
        bl=jnp.asarray(p["bl"], jnp.float32).reshape(1, 1),
        table=pad_mat(table, table.shape[0], Dp),
    )


def pitch_predictor_forward(x, params, *, vocab_size, max_pitch,
                            beta=1.0, eps=1e-5, rows_target=1024,
                            return_buckets=False):
    B, T, D = x.shape
    F = params["b1"].shape[-1]
    V = vocab_size
    Dp = _round_up(D, 128)
    Fp = _round_up(F, 128)

    # Fold batch into the row tiling: each grid step gets BB whole utterances.
    # T_pad is a multiple of 16 so the bf16 x row blocks stay tile-aligned.
    T_pad = _round_up(T, 16)
    BB = max(1, min(B, -(-rows_target // T_pad)))
    G = -(-B // BB)
    if G == 1 and B > 1:
        # v7x has two TensorCores on the "parallel" grid axis: make sure the
        # second one gets work even when the whole batch fits one block.
        BB = -(-B // 2)
        G = -(-B // BB)
    B_pad = G * BB
    R = BB * T_pad                                  # rows per grid step

    # x is only ever consumed as a bf16 matmul operand: ship it in bf16
    # (halves the dominant HBM input stream and its VMEM double buffer).
    x_p = jnp.pad(x.astype(jnp.float32),
                  ((0, B_pad - B), (0, T_pad - T), (0, Dp - D)))
    x_p = x_p.reshape(B_pad * T_pad, Dp).astype(jnp.bfloat16)

    pk = _pack_params(params, Dp, Fp)

    # Per-row conv masks: re-apply Conv1d's zero padding at every utterance
    # boundary (t == 0 for the left neighbour, t == T-1 for the right one).
    t_idx = jnp.arange(T_pad)
    m_first = jnp.tile((t_idx != 0).astype(jnp.float32), BB).reshape(R, 1)
    m_last = jnp.tile((t_idx != T - 1).astype(jnp.float32), BB).reshape(R, 1)

    inv_step = float(V - 1) / math.log1p(float(max_pitch))

    kernel = functools.partial(_pitch_kernel, float(beta), float(eps),
                               int(F), inv_step, V, bool(return_buckets))

    def tile_spec(last):
        return pl.BlockSpec((R, last), lambda g: (g, 0))

    def const_spec(a):
        # Constant-index-map params are only DMA'd once.  TODO(synk): on v7x's
        # 64 MiB VMEM, single-buffer them with pipeline_mode=pl.Buffered(1).
        return pl.BlockSpec(a.shape, lambda g: (0, 0))

    in_specs = [
        tile_spec(Dp),                              # x rows (bf16)
        const_spec(m_first), const_spec(m_last),
        const_spec(pk["w1c"]), const_spec(pk["b1"]),
        const_spec(pk["g1"]), const_spec(pk["be1"]),
        const_spec(pk["w2c"]), const_spec(pk["b2"]),
        const_spec(pk["g2"]), const_spec(pk["be2"]),
        const_spec(pk["wl"]), const_spec(pk["bl"]),
        const_spec(pk["table"]),
    ]
    out_specs = [tile_spec(Dp), tile_spec(1)]       # embeddings, pitch
    out_shape = [
        jax.ShapeDtypeStruct((B_pad * T_pad, Dp), jnp.float32),
        jax.ShapeDtypeStruct((B_pad * T_pad, 1), jnp.float32),
    ]
    if return_buckets:                               # bucket output only on request
        out_specs.append(tile_spec(1))
        out_shape.append(jax.ShapeDtypeStruct((B_pad * T_pad, 1), jnp.int32))

    # TODO(synk): for very long utterances whose whole-T blocks approach the
    # v7x 64 MiB VMEM budget, add a halo-exchanging time tiling.
    outs = pl.pallas_call(
        kernel,
        out_shape=tuple(out_shape),
        grid_spec=pltpu.PrefetchScalarGridSpec(
            num_scalar_prefetch=0,
            grid=(G,),
            in_specs=in_specs,
            out_specs=tuple(out_specs),
            scratch_shapes=[pltpu.VMEM((R + 16, max(Dp, Fp)), jnp.float32)]),
        compiler_params=pltpu.CompilerParams(
            dimension_semantics=("parallel",),
            vmem_limit_bytes=32 * 1024 * 1024),
    )(x_p, m_first, m_last,
      pk["w1c"], pk["b1"], pk["g1"], pk["be1"],
      pk["w2c"], pk["b2"], pk["g2"], pk["be2"],
      pk["wl"], pk["bl"], pk["table"])

    # torch returns embeds(buckets) of shape (B, T, 1, D) since pitch is (B, T, 1).
    emb = outs[0].reshape(B_pad, T_pad, Dp)[:B, :T, :D].reshape(B, T, 1, D)
    pitch = outs[1].reshape(B_pad, T_pad, 1)[:B, :T]
    if return_buckets:
        buckets = outs[2].reshape(B_pad, T_pad, 1)[:B, :T]
        return emb, pitch, buckets
    return emb, pitch


def init_params(key, embed_dim, filter_size, vocab_size):
    D, F, V = embed_dim, filter_size, vocab_size
    ks = jax.random.split(key, 6)
    return dict(
        # Conv1d taps stored as (K, in, out): tap k multiplies x[t - 1 + k].
        w1=0.1 * jax.random.normal(ks[0], (3, D, F), jnp.float32),
        b1=0.05 * jax.random.normal(ks[1], (F,), jnp.float32),
        g1=jnp.ones((F,), jnp.float32),
        be1=jnp.zeros((F,), jnp.float32),
        w2=0.1 * jax.random.normal(ks[2], (3, F, F), jnp.float32),
        b2=0.05 * jax.random.normal(ks[3], (F,), jnp.float32),
        g2=jnp.ones((F,), jnp.float32),
        be2=jnp.zeros((F,), jnp.float32),
        wl=0.1 * jax.random.normal(ks[4], (F,), jnp.float32),
        bl=jnp.asarray(0.01, jnp.float32),
        table=0.1 * jax.random.normal(ks[5], (V, D), jnp.float32),
    )


def reference_forward(x, p, beta=1.0, eps=1e-5):
    """Pure-JAX reference of the predictor hot path with the kernel's precision
    policy (bf16 matmul operands, f32 accumulation, f32 elementwise)."""
    bf16, f32 = jnp.bfloat16, jnp.float32

    def conv3(h, w, b):
        z = jnp.zeros_like(h[:, :1, :])
        hm = jnp.concatenate([z, h[:, :-1, :]], axis=1)
        hp = jnp.concatenate([h[:, 1:, :], z], axis=1)
        y = (jnp.dot(hm.astype(bf16), w[0].astype(bf16), preferred_element_type=f32)
             + jnp.dot(h.astype(bf16), w[1].astype(bf16), preferred_element_type=f32)
             + jnp.dot(hp.astype(bf16), w[2].astype(bf16), preferred_element_type=f32))
        return y + b

    def ln(h, g, b):
        mu = h.mean(-1, keepdims=True)
        var = ((h - mu) ** 2).mean(-1, keepdims=True)
        return (h - mu) * jax.lax.rsqrt(var + eps) * g + b

    h = ln(jnp.maximum(conv3(x, p["w1"], p["b1"]), 0.0), p["g1"], p["be1"])
    h = ln(jnp.maximum(conv3(h, p["w2"], p["b2"]), 0.0), p["g2"], p["be2"])
    raw = h @ p["wl"].reshape(-1, 1) + p["bl"]
    return jnp.exp(raw) * beta


if __name__ == "__main__":
    # Small, module-consistent sizes.
    B, T = 2, 8
    embed_dim = 32
    filter_size = 32
    vocab_size = 256
    max_pitch = 300.0
    beta = 1.0

    key = jax.random.PRNGKey(0)
    kx, kp = jax.random.split(key)
    x = jax.random.normal(kx, (B, T, embed_dim), jnp.float32)
    params = init_params(kp, embed_dim, filter_size, vocab_size)

    # Production path (no bucket output stream).
    emb0, pitch0 = pitch_predictor_forward(
        x, params, vocab_size=vocab_size, max_pitch=max_pitch, beta=beta)
    # Debug path (buckets also returned) used for the self-checks below.
    emb, pitch, buckets = pitch_predictor_forward(
        x, params, vocab_size=vocab_size, max_pitch=max_pitch, beta=beta,
        return_buckets=True)
    jax.block_until_ready((emb0, pitch0, emb, pitch, buckets))

    assert emb.shape == (B, T, 1, embed_dim)
    assert pitch.shape == (B, T, 1)
    assert buckets.shape == (B, T, 1)
    # Both kernel variants must agree.
    assert jnp.allclose(pitch0, pitch) and jnp.allclose(emb0, emb)

    # Predictor hot path vs a pure-JAX reference with the same precision policy.
    pitch_ref = reference_forward(x, params, beta=beta)
    assert jnp.allclose(pitch, pitch_ref, rtol=1e-2, atol=1e-3), \
        float(jnp.max(jnp.abs(pitch - pitch_ref)))

    # Embedding rows must be the table rows selected by the kernel's buckets.
    expected_emb = params["table"][buckets.reshape(-1)].reshape(B, T, 1, embed_dim)
    assert jnp.allclose(emb, expected_emb, rtol=1e-5, atol=1e-5)

    # Bucket indices must be consistent with closed-form bucketize of the
    # returned pitch (uniform linspace boundaries, clipped to vocab_size - 1).
    inv_step = (vocab_size - 1) / math.log1p(max_pitch)
    ext = jnp.clip(jnp.ceil(jnp.log1p(pitch) * inv_step),
                   0, vocab_size - 1).astype(jnp.int32)
    assert int(jnp.max(jnp.abs(ext - buckets))) <= 1
    assert 0 <= int(jnp.min(buckets)) and int(jnp.max(buckets)) < vocab_size

    print("KERNEL_OK")
</pallas_src>

<mosaic_0001>
module attributes {stable_mosaic.version = 11 : i64} {
  func.func @_pitch_kernel(%arg0: i32, %arg1: memref<16x128xbf16, #tpu.memory_space<vmem>>, %arg2: memref<16x1xf32, #tpu.memory_space<vmem>>, %arg3: memref<16x1xf32, #tpu.memory_space<vmem>>, %arg4: memref<384x128xbf16, #tpu.memory_space<vmem>>, %arg5: memref<1x128xf32, #tpu.memory_space<vmem>>, %arg6: memref<1x128xf32, #tpu.memory_space<vmem>>, %arg7: memref<1x128xf32, #tpu.memory_space<vmem>>, %arg8: memref<384x128xbf16, #tpu.memory_space<vmem>>, %arg9: memref<1x128xf32, #tpu.memory_space<vmem>>, %arg10: memref<1x128xf32, #tpu.memory_space<vmem>>, %arg11: memref<1x128xf32, #tpu.memory_space<vmem>>, %arg12: memref<1x128xf32, #tpu.memory_space<vmem>>, %arg13: memref<1x1xf32, #tpu.memory_space<vmem>>, %arg14: memref<256x128xf32, #tpu.memory_space<vmem>>, %arg15: memref<16x128xf32, #tpu.memory_space<vmem>>, %arg16: memref<16x1xf32, #tpu.memory_space<vmem>>, %arg17: memref<32x128xf32, #tpu.memory_space<vmem>>) attributes {dimension_semantics = [#tpu.dimension_semantics<parallel>], iteration_bounds = array<i64: 2>, scalar_prefetch = 0 : i64, scratch_operands = 1 : i64, tpu.core_type = #tpu.core_type<tc>, window_params = [{transform_indices = @transform_0, window_bounds = array<i64: 16, 128>}, {pipeline_mode = #tpu.pipeline_mode<synchronous>, transform_indices = @transform_1, window_bounds = array<i64: 16, 1>}, {pipeline_mode = #tpu.pipeline_mode<synchronous>, transform_indices = @transform_2, window_bounds = array<i64: 16, 1>}, {pipeline_mode = #tpu.pipeline_mode<synchronous>, transform_indices = @transform_3, window_bounds = array<i64: 384, 128>}, {pipeline_mode = #tpu.pipeline_mode<synchronous>, transform_indices = @transform_4, window_bounds = array<i64: 1, 128>}, {pipeline_mode = #tpu.pipeline_mode<synchronous>, transform_indices = @transform_5, window_bounds = array<i64: 1, 128>}, {pipeline_mode = #tpu.pipeline_mode<synchronous>, transform_indices = @transform_6, window_bounds = array<i64: 1, 128>}, {pipeline_mode = #tpu.pipeline_mode<synchronous>, transform_indices = @transform_7, window_bounds = array<i64: 384, 128>}, {pipeline_mode = #tpu.pipeline_mode<synchronous>, transform_indices = @transform_8, window_bounds = array<i64: 1, 128>}, {pipeline_mode = #tpu.pipeline_mode<synchronous>, transform_indices = @transform_9, window_bounds = array<i64: 1, 128>}, {pipeline_mode = #tpu.pipeline_mode<synchronous>, transform_indices = @transform_10, window_bounds = array<i64: 1, 128>}, {pipeline_mode = #tpu.pipeline_mode<synchronous>, transform_indices = @transform_11, window_bounds = array<i64: 1, 128>}, {pipeline_mode = #tpu.pipeline_mode<synchronous>, transform_indices = @transform_12, window_bounds = array<i64: 1, 1>}, {pipeline_mode = #tpu.pipeline_mode<synchronous>, transform_indices = @transform_13, window_bounds = array<i64: 256, 128>}, {transform_indices = @transform_14, window_bounds = array<i64: 16, 128>}, {transform_indices = @transform_15, window_bounds = array<i64: 16, 1>}]} {
    %c0 = arith.constant 0 : index
    %c0_0 = arith.constant 0 : index
    %0 = vector.load %arg1[%c0, %c0_0] : memref<16x128xbf16, #tpu.memory_space<vmem>>, vector<16x128xbf16>
    %c0_1 = arith.constant 0 : index
    %c0_2 = arith.constant 0 : index
    %1 = vector.load %arg2[%c0_1, %c0_2] : memref<16x1xf32, #tpu.memory_space<vmem>>, vector<16x1xf32>
    %c0_3 = arith.constant 0 : index
    %c0_4 = arith.constant 0 : index
    %2 = vector.load %arg3[%c0_3, %c0_4] : memref<16x1xf32, #tpu.memory_space<vmem>>, vector<16x1xf32>
    %cst = arith.constant 0.000000e+00 : f32
    %3 = vector.broadcast %cst : f32 to vector<8x128xf32>
    %c0_5 = arith.constant 0 : index
    %c0_6 = arith.constant 0 : index
    %4 = vector.load %arg17[%c0_5, %c0_6] : memref<32x128xf32, #tpu.memory_space<vmem>>, vector<8x128xf32>
    tpu.vector_store %arg17[%c0_5, %c0_6], %3 {strides = array<i32>} : memref<32x128xf32, #tpu.memory_space<vmem>>, vector<8x128xf32>,
    %c24 = arith.constant 24 : index
    %c0_7 = arith.constant 0 : index
    %5 = vector.load %arg17[%c24, %c0_7] : memref<32x128xf32, #tpu.memory_space<vmem>>, vector<8x128xf32>
    tpu.vector_store %arg17[%c24, %c0_7], %3 {strides = array<i32>} : memref<32x128xf32, #tpu.memory_space<vmem>>, vector<8x128xf32>,
    %6 = tpu.iota {dimensions = array<i32: 1>} : vector<16x128xi32>
    %c32_i32 = arith.constant 32 : i32
    %7 = vector.broadcast %c32_i32 : i32 to vector<16x128xi32>
    %8 = arith.cmpi slt, %6, %7 : vector<16x128xi32>
    %9 = arith.extf %0 : vector<16x128xbf16> to vector<16x128xf32>
    %c8 = arith.constant 8 : index
    %c0_8 = arith.constant 0 : index
    %10 = vector.load %arg17[%c8, %c0_8] : memref<32x128xf32, #tpu.memory_space<vmem>>, vector<16x128xf32>
    tpu.vector_store %arg17[%c8, %c0_8], %9 {strides = array<i32>} : memref<32x128xf32, #tpu.memory_space<vmem>>, vector<16x128xf32>,
    %c7 = arith.constant 7 : index
    %c0_9 = arith.constant 0 : index
    %11 = vector.load %arg17[%c7, %c0_9] : memref<32x128xf32, #tpu.memory_space<vmem>>, vector<16x128xf32>
    %12 = arith.truncf %11 : vector<16x128xf32> to vector<16x128xbf16>
    %c9 = arith.constant 9 : index
    %c0_10 = arith.constant 0 : index
    %13 = vector.load %arg17[%c9, %c0_10] : memref<32x128xf32, #tpu.memory_space<vmem>>, vector<16x128xf32>
    %14 = arith.truncf %13 : vector<16x128xf32> to vector<16x128xbf16>
    %c128 = arith.constant 128 : index
    %c0_11 = arith.constant 0 : index
    %15 = vector.load %arg4[%c128, %c0_11] : memref<384x128xbf16, #tpu.memory_space<vmem>>, vector<128x128xbf16>
    %cst_12 = arith.constant dense<0.000000e+00> : vector<16x128xf32>
    %16 = tpu.matmul %0, %15, %cst_12 {dimension_numbers = #tpu.dot_dimension_numbers<[1], [0], [0], [1], [0, 0, 1, 1], [], []>} : vector<16x128xbf16>, vector<128x128xbf16>, vector<16x128xf32> -> vector<16x128xf32>
    %c0_13 = arith.constant 0 : index
    %c0_14 = arith.constant 0 : index
    %17 = vector.load %arg4[%c0_13, %c0_14] : memref<384x128xbf16, #tpu.memory_space<vmem>>, vector<128x128xbf16>
    %cst_15 = arith.constant dense<0.000000e+00> : vector<16x128xf32>
    %18 = tpu.matmul %12, %17, %cst_15 {dimension_numbers = #tpu.dot_dimension_numbers<[1], [0], [0], [1], [0, 0, 1, 1], [], []>} : vector<16x128xbf16>, vector<128x128xbf16>, vector<16x128xf32> -> vector<16x128xf32>
    %19 = vector.broadcast %1 : vector<16x1xf32> to vector<16x128xf32>
    %20 = arith.mulf %19, %18 : vector<16x128xf32>
    %21 = arith.addf %16, %20 : vector<16x128xf32>
    %c256 = arith.constant 256 : index
    %c0_16 = arith.constant 0 : index
    %22 = vector.load %arg4[%c256, %c0_16] : memref<384x128xbf16, #tpu.memory_space<vmem>>, vector<128x128xbf16>
    %cst_17 = arith.constant dense<0.000000e+00> : vector<16x128xf32>
    %23 = tpu.matmul %14, %22, %cst_17 {dimension_numbers = #tpu.dot_dimension_numbers<[1], [0], [0], [1], [0, 0, 1, 1], [], []>} : vector<16x128xbf16>, vector<128x128xbf16>, vector<16x128xf32> -> vector<16x128xf32>
    %24 = vector.broadcast %2 : vector<16x1xf32> to vector<16x128xf32>
    %25 = arith.mulf %24, %23 : vector<16x128xf32>
    %26 = arith.addf %21, %25 : vector<16x128xf32>
    %c0_18 = arith.constant 0 : index
    %c0_19 = arith.constant 0 : index
    %27 = vector.load %arg5[%c0_18, %c0_19] : memref<1x128xf32, #tpu.memory_space<vmem>>, vector<1x128xf32>
    %28 = vector.broadcast %27 : vector<1x128xf32> to vector<16x128xf32>
    %29 = arith.addf %26, %28 : vector<16x128xf32>
    %cst_20 = arith.constant 0.000000e+00 : f32
    %30 = vector.broadcast %cst_20 : f32 to vector<16x128xf32>
    %31 = arith.maximumf %29, %30 : vector<16x128xf32>
    %cst_21 = arith.constant dense<0.000000e+00> : vector<16xf32>
    %32 = vector.multi_reduction <add>, %31, %cst_21 [1] : vector<16x128xf32> to vector<16xf32>
    %33 = vector.shape_cast %32 : vector<16xf32> to vector<16x1xf32>
    %cst_22 = arith.constant 3.125000e-02 : f32
    %34 = vector.broadcast %cst_22 : f32 to vector<16x1xf32>
    %35 = arith.mulf %33, %34 : vector<16x1xf32>
    %36 = vector.broadcast %35 : vector<16x1xf32> to vector<16x128xf32>
    %37 = arith.subf %31, %36 : vector<16x128xf32>
    %cst_23 = arith.constant 0.000000e+00 : f32
    %38 = vector.broadcast %cst_23 : f32 to vector<16x128xf32>
    %39 = arith.select %8, %37, %38 : vector<16x128xi1>, vector<16x128xf32>
    %40 = arith.mulf %39, %39 : vector<16x128xf32>
    %cst_24 = arith.constant dense<0.000000e+00> : vector<16xf32>
    %41 = vector.multi_reduction <add>, %40, %cst_24 [1] : vector<16x128xf32> to vector<16xf32>
    %42 = vector.shape_cast %41 : vector<16xf32> to vector<16x1xf32>
    %cst_25 = arith.constant 3.125000e-02 : f32
    %43 = vector.broadcast %cst_25 : f32 to vector<16x1xf32>
    %44 = arith.mulf %42, %43 : vector<16x1xf32>
    %cst_26 = arith.constant 9.99999974E-6 : f32
    %45 = vector.broadcast %cst_26 : f32 to vector<16x1xf32>
    %46 = arith.addf %44, %45 : vector<16x1xf32>
    %47 = math.rsqrt %46 : vector<16x1xf32>
    %48 = vector.broadcast %47 : vector<16x1xf32> to vector<16x128xf32>
    %49 = arith.mulf %39, %48 : vector<16x128xf32>
    %c0_27 = arith.constant 0 : index
    %c0_28 = arith.constant 0 : index
    %50 = vector.load %arg6[%c0_27, %c0_28] : memref<1x128xf32, #tpu.memory_space<vmem>>, vector<1x128xf32>
    %51 = vector.broadcast %50 : vector<1x128xf32> to vector<16x128xf32>
    %52 = arith.mulf %49, %51 : vector<16x128xf32>
    %c0_29 = arith.constant 0 : index
    %c0_30 = arith.constant 0 : index
    %53 = vector.load %arg7[%c0_29, %c0_30] : memref<1x128xf32, #tpu.memory_space<vmem>>, vector<1x128xf32>
    %54 = vector.broadcast %53 : vector<1x128xf32> to vector<16x128xf32>
    %55 = arith.addf %52, %54 : vector<16x128xf32>
    %56 = arith.truncf %55 : vector<16x128xf32> to vector<16x128xbf16>
    %c8_31 = arith.constant 8 : index
    %c0_32 = arith.constant 0 : index
    %57 = vector.load %arg17[%c8_31, %c0_32] : memref<32x128xf32, #tpu.memory_space<vmem>>, vector<16x128xf32>
    tpu.vector_store %arg17[%c8_31, %c0_32], %55 {strides = array<i32>} : memref<32x128xf32, #tpu.memory_space<vmem>>, vector<16x128xf32>,
    %c7_33 = arith.constant 7 : index
    %c0_34 = arith.constant 0 : index
    %58 = vector.load %arg17[%c7_33, %c0_34] : memref<32x128xf32, #tpu.memory_space<vmem>>, vector<16x128xf32>
    %59 = arith.truncf %58 : vector<16x128xf32> to vector<16x128xbf16>
    %c9_35 = arith.constant 9 : index
    %c0_36 = arith.constant 0 : index
    %60 = vector.load %arg17[%c9_35, %c0_36] : memref<32x128xf32, #tpu.memory_space<vmem>>, vector<16x128xf32>
    %61 = arith.truncf %60 : vector<16x128xf32> to vector<16x128xbf16>
    %c128_37 = arith.constant 128 : index
    %c0_38 = arith.constant 0 : index
    %62 = vector.load %arg8[%c128_37, %c0_38] : memref<384x128xbf16, #tpu.memory_space<vmem>>, vector<128x128xbf16>
    %cst_39 = arith.constant dense<0.000000e+00> : vector<16x128xf32>
    %63 = tpu.matmul %56, %62, %cst_39 {dimension_numbers = #tpu.dot_dimension_numbers<[1], [0], [0], [1], [0, 0, 1, 1], [], []>} : vector<16x128xbf16>, vector<128x128xbf16>, vector<16x128xf32> -> vector<16x128xf32>
    %c0_40 = arith.constant 0 : index
    %c0_41 = arith.constant 0 : index
    %64 = vector.load %arg8[%c0_40, %c0_41] : memref<384x128xbf16, #tpu.memory_space<vmem>>, vector<128x128xbf16>
    %cst_42 = arith.constant dense<0.000000e+00> : vector<16x128xf32>
    %65 = tpu.matmul %59, %64, %cst_42 {dimension_numbers = #tpu.dot_dimension_numbers<[1], [0], [0], [1], [0, 0, 1, 1], [], []>} : vector<16x128xbf16>, vector<128x128xbf16>, vector<16x128xf32> -> vector<16x128xf32>
    %66 = vector.broadcast %1 : vector<16x1xf32> to vector<16x128xf32>
    %67 = arith.mulf %66, %65 : vector<16x128xf32>
    %68 = arith.addf %63, %67 : vector<16x128xf32>
    %c256_43 = arith.constant 256 : index
    %c0_44 = arith.constant 0 : index
    %69 = vector.load %arg8[%c256_43, %c0_44] : memref<384x128xbf16, #tpu.memory_space<vmem>>, vector<128x128xbf16>
    %cst_45 = arith.constant dense<0.000000e+00> : vector<16x128xf32>
    %70 = tpu.matmul %61, %69, %cst_45 {dimension_numbers = #tpu.dot_dimension_numbers<[1], [0], [0], [1], [0, 0, 1, 1], [], []>} : vector<16x128xbf16>, vector<128x128xbf16>, vector<16x128xf32> -> vector<16x128xf32>
    %71 = vector.broadcast %2 : vector<16x1xf32> to vector<16x128xf32>
    %72 = arith.mulf %71, %70 : vector<16x128xf32>
    %73 = arith.addf %68, %72 : vector<16x128xf32>
    %c0_46 = arith.constant 0 : index
    %c0_47 = arith.constant 0 : index
    %74 = vector.load %arg9[%c0_46, %c0_47] : memref<1x128xf32, #tpu.memory_space<vmem>>, vector<1x128xf32>
    %75 = vector.broadcast %74 : vector<1x128xf32> to vector<16x128xf32>
    %76 = arith.addf %73, %75 : vector<16x128xf32>
    %cst_48 = arith.constant 0.000000e+00 : f32
    %77 = vector.broadcast %cst_48 : f32 to vector<16x128xf32>
    %78 = arith.maximumf %76, %77 : vector<16x128xf32>
    %cst_49 = arith.constant dense<0.000000e+00> : vector<16xf32>
    %79 = vector.multi_reduction <add>, %78, %cst_49 [1] : vector<16x128xf32> to vector<16xf32>
    %80 = vector.shape_cast %79 : vector<16xf32> to vector<16x1xf32>
    %cst_50 = arith.constant 3.125000e-02 : f32
    %81 = vector.broadcast %cst_50 : f32 to vector<16x1xf32>
    %82 = arith.mulf %80, %81 : vector<16x1xf32>
    %83 = vector.broadcast %82 : vector<16x1xf32> to vector<16x128xf32>
    %84 = arith.subf %78, %83 : vector<16x128xf32>
    %cst_51 = arith.constant 0.000000e+00 : f32
    %85 = vector.broadcast %cst_51 : f32 to vector<16x128xf32>
    %86 = arith.select %8, %84, %85 : vector<16x128xi1>, vector<16x128xf32>
    %87 = arith.mulf %86, %86 : vector<16x128xf32>
    %cst_52 = arith.constant dense<0.000000e+00> : vector<16xf32>
    %88 = vector.multi_reduction <add>, %87, %cst_52 [1] : vector<16x128xf32> to vector<16xf32>
    %89 = vector.shape_cast %88 : vector<16xf32> to vector<16x1xf32>
    %cst_53 = arith.constant 3.125000e-02 : f32
    %90 = vector.broadcast %cst_53 : f32 to vector<16x1xf32>
    %91 = arith.mulf %89, %90 : vector<16x1xf32>
    %cst_54 = arith.constant 9.99999974E-6 : f32
    %92 = vector.broadcast %cst_54 : f32 to vector<16x1xf32>
    %93 = arith.addf %91, %92 : vector<16x1xf32>
    %94 = math.rsqrt %93 : vector<16x1xf32>
    %95 = vector.broadcast %94 : vector<16x1xf32> to vector<16x128xf32>
    %96 = arith.mulf %86, %95 : vector<16x128xf32>
    %c0_55 = arith.constant 0 : index
    %c0_56 = arith.constant 0 : index
    %97 = vector.load %arg10[%c0_55, %c0_56] : memref<1x128xf32, #tpu.memory_space<vmem>>, vector<1x128xf32>
    %98 = vector.broadcast %97 : vector<1x128xf32> to vector<16x128xf32>
    %99 = arith.mulf %96, %98 : vector<16x128xf32>
    %c0_57 = arith.constant 0 : index
    %c0_58 = arith.constant 0 : index
    %100 = vector.load %arg11[%c0_57, %c0_58] : memref<1x128xf32, #tpu.memory_space<vmem>>, vector<1x128xf32>
    %101 = vector.broadcast %100 : vector<1x128xf32> to vector<16x128xf32>
    %102 = arith.addf %99, %101 : vector<16x128xf32>
    %c0_59 = arith.constant 0 : index
    %c0_60 = arith.constant 0 : index
    %103 = vector.load %arg12[%c0_59, %c0_60] : memref<1x128xf32, #tpu.memory_space<vmem>>, vector<1x128xf32>
    %104 = vector.broadcast %103 : vector<1x128xf32> to vector<16x128xf32>
    %105 = arith.mulf %102, %104 : vector<16x128xf32>
    %cst_61 = arith.constant dense<0.000000e+00> : vector<16xf32>
    %106 = vector.multi_reduction <add>, %105, %cst_61 [1] : vector<16x128xf32> to vector<16xf32>
    %107 = vector.shape_cast %106 : vector<16xf32> to vector<16x1xf32>
    %c0_62 = arith.constant 0 : index
    %c0_63 = arith.constant 0 : index
    %108 = vector.load %arg13[%c0_62, %c0_63] : memref<1x1xf32, #tpu.memory_space<vmem>>, vector<1x1xf32>
    %109 = vector.broadcast %108 : vector<1x1xf32> to vector<16x1xf32>
    %110 = arith.addf %107, %109 : vector<16x1xf32>
    %111 = math.exp %110 : vector<16x1xf32>
    %cst_64 = arith.constant 1.000000e+00 : f32
    %112 = vector.broadcast %cst_64 : f32 to vector<16x1xf32>
    %113 = arith.mulf %111, %112 : vector<16x1xf32>
    %114 = math.log1p %113 : vector<16x1xf32>
    %cst_65 = arith.constant 44.6811066 : f32
    %115 = vector.broadcast %cst_65 : f32 to vector<16x1xf32>
    %116 = arith.mulf %114, %115 : vector<16x1xf32>
    %117 = math.ceil %116 : vector<16x1xf32>
    %cst_66 = arith.constant 0.000000e+00 : f32
    %cst_67 = arith.constant 2.550000e+02 : f32
    %118 = vector.broadcast %cst_66 : f32 to vector<16x1xf32>
    %119 = arith.maximumf %118, %117 : vector<16x1xf32>
    %120 = vector.broadcast %cst_67 : f32 to vector<16x1xf32>
    %121 = arith.minimumf %120, %119 : vector<16x1xf32>
    %122 = arith.fptosi %121 : vector<16x1xf32> to vector<16x1xi32>
    %123 = tpu.iota {dimensions = array<i32: 1>} : vector<16x256xi32>
    %124 = vector.broadcast %122 : vector<16x1xi32> to vector<16x256xi32>
    %125 = arith.cmpi eq, %123, %124 : vector<16x256xi32>
    %126 = arith.extui %125 : vector<16x256xi1> to vector<16x256xi32>
    %127 = arith.sitofp %126 : vector<16x256xi32> to vector<16x256xf32>
    %c0_68 = arith.constant 0 : index
    %c0_69 = arith.constant 0 : index
    %128 = vector.load %arg14[%c0_68, %c0_69] : memref<256x128xf32, #tpu.memory_space<vmem>>, vector<256x128xf32>
    %cst_70 = arith.constant dense<0.000000e+00> : vector<16x128xf32>
    %129 = tpu.matmul %127, %128, %cst_70 {dimension_numbers = #tpu.dot_dimension_numbers<[1], [0], [0], [1], [0, 0, 1, 1], [], []>} : vector<16x256xf32>, vector<256x128xf32>, vector<16x128xf32> -> vector<16x128xf32>
    %c0_71 = arith.constant 0 : index
    %c0_72 = arith.constant 0 : index
    %130 = vector.load %arg15[%c0_71, %c0_72] : memref<16x128xf32, #tpu.memory_space<vmem>>, vector<16x128xf32>
    tpu.vector_store %arg15[%c0_71, %c0_72], %129 {strides = array<i32>} : memref<16x128xf32, #tpu.memory_space<vmem>>, vector<16x128xf32>,
    %c0_73 = arith.constant 0 : index
    %c0_74 = arith.constant 0 : index
    %131 = vector.load %arg16[%c0_73, %c0_74] : memref<16x1xf32, #tpu.memory_space<vmem>>, vector<16x1xf32>
    tpu.vector_store %arg16[%c0_73, %c0_74], %113 {strides = array<i32>} : memref<16x1xf32, #tpu.memory_space<vmem>>, vector<16x1xf32>,
    return
  }
  func.func @transform_0(%arg0: i32) -> (i32, i32) {
    %c0_i32 = arith.constant 0 : i32
    %c0_i32_0 = arith.constant 0 : i32
    return %arg0, %c0_i32 : i32, i32
  }
  func.func @transform_1(%arg0: i32) -> (i32, i32) {
    %c0_i32 = arith.constant 0 : i32
    %c0_i32_0 = arith.constant 0 : i32
    %c0_i32_1 = arith.constant 0 : i32
    return %c0_i32, %c0_i32_0 : i32, i32
  }
  func.func @transform_2(%arg0: i32) -> (i32, i32) {
    %c0_i32 = arith.constant 0 : i32
    %c0_i32_0 = arith.constant 0 : i32
    %c0_i32_1 = arith.constant 0 : i32
    return %c0_i32, %c0_i32_0 : i32, i32
  }
  func.func @transform_3(%arg0: i32) -> (i32, i32) {
    %c0_i32 = arith.constant 0 : i32
    %c0_i32_0 = arith.constant 0 : i32
    %c0_i32_1 = arith.constant 0 : i32
    return %c0_i32, %c0_i32_0 : i32, i32
  }
  func.func @transform_4(%arg0: i32) -> (i32, i32) {
    %c0_i32 = arith.constant 0 : i32
    %c0_i32_0 = arith.constant 0 : i32
    %c0_i32_1 = arith.constant 0 : i32
    return %c0_i32, %c0_i32_0 : i32, i32
  }
  func.func @transform_5(%arg0: i32) -> (i32, i32) {
    %c0_i32 = arith.constant 0 : i32
    %c0_i32_0 = arith.constant 0 : i32
    %c0_i32_1 = arith.constant 0 : i32
    return %c0_i32, %c0_i32_0 : i32, i32
  }
  func.func @transform_6(%arg0: i32) -> (i32, i32) {
    %c0_i32 = arith.constant 0 : i32
    %c0_i32_0 = arith.constant 0 : i32
    %c0_i32_1 = arith.constant 0 : i32
    return %c0_i32, %c0_i32_0 : i32, i32
  }
  func.func @transform_7(%arg0: i32) -> (i32, i32) {
    %c0_i32 = arith.constant 0 : i32
    %c0_i32_0 = arith.constant 0 : i32
    %c0_i32_1 = arith.constant 0 : i32
    return %c0_i32, %c0_i32_0 : i32, i32
  }
  func.func @transform_8(%arg0: i32) -> (i32, i32) {
    %c0_i32 = arith.constant 0 : i32
    %c0_i32_0 = arith.constant 0 : i32
    %c0_i32_1 = arith.constant 0 : i32
    return %c0_i32, %c0_i32_0 : i32, i32
  }
  func.func @transform_9(%arg0: i32) -> (i32, i32) {
    %c0_i32 = arith.constant 0 : i32
    %c0_i32_0 = arith.constant 0 : i32
    %c0_i32_1 = arith.constant 0 : i32
    return %c0_i32, %c0_i32_0 : i32, i32
  }
  func.func @transform_10(%arg0: i32) -> (i32, i32) {
    %c0_i32 = arith.constant 0 : i32
    %c0_i32_0 = arith.constant 0 : i32
    %c0_i32_1 = arith.constant 0 : i32
    return %c0_i32, %c0_i32_0 : i32, i32
  }
  func.func @transform_11(%arg0: i32) -> (i32, i32) {
    %c0_i32 = arith.constant 0 : i32
    %c0_i32_0 = arith.constant 0 : i32
    %c0_i32_1 = arith.constant 0 : i32
    return %c0_i32, %c0_i32_0 : i32, i32
  }
  func.func @transform_12(%arg0: i32) -> (i32, i32) {
    %c0_i32 = arith.constant 0 : i32
    %c0_i32_0 = arith.constant 0 : i32
    %c0_i32_1 = arith.constant 0 : i32
    return %c0_i32, %c0_i32_0 : i32, i32
  }
  func.func @transform_13(%arg0: i32) -> (i32, i32) {
    %c0_i32 = arith.constant 0 : i32
    %c0_i32_0 = arith.constant 0 : i32
    %c0_i32_1 = arith.constant 0 : i32
    return %c0_i32, %c0_i32_0 : i32, i32
  }
  func.func @transform_14(%arg0: i32) -> (i32, i32) {
    %c0_i32 = arith.constant 0 : i32
    %c0_i32_0 = arith.constant 0 : i32
    return %arg0, %c0_i32 : i32, i32
  }
  func.func @transform_15(%arg0: i32) -> (i32, i32) {
    %c0_i32 = arith.constant 0 : i32
    %c0_i32_0 = arith.constant 0 : i32
    return %arg0, %c0_i32 : i32, i32
  }
}

</mosaic_0001>

<llo_original>
// kernel: tpu_custom_call.1
$region0: #{tpu_custom_call.1}
  #allocation0 [shape = 'u32[]', space=smem, size = 0x4, offset = 0x4, fixed_abs, tag = 'smem constant byte address 0x4 - core index']
  #allocation1 [shape = 'u32[144,128]{1,0:T(1,128)}', space=vmem, size = 0x12000, scoped, tag = 'internal scratch']
  #allocation2 [shape = 'f32[32,128]{1,0:T(8,128)}', space=vmem, size = 0x4000, scoped, tag = 'scratch operand']
  #allocation3 [shape = 'f32[1,1]{1,0:T(1,128)S(1)}', space=vmem, size = 0x200, scoped, tag = 'scoped memory for tpu_custom_call.1']
  %s0 = inlined_call_operand.vmem [shape: bf16[32,128], index: 0, kind: input, shape index: {}]
  %s1 = inlined_call_operand.vmem [shape: f32[16,1], index: 1, kind: input, shape index: {}]
  %s2 = inlined_call_operand.vmem [shape: f32[16,1], index: 2, kind: input, shape index: {}]
  %s3 = inlined_call_operand.hbm [shape: bf16[384,128], index: 3, kind: input, shape index: {}]
  %s4 = inlined_call_operand.vmem [shape: f32[1,128], index: 4, kind: input, shape index: {}]
  %s5 = inlined_call_operand.vmem [shape: f32[1,128], index: 5, kind: input, shape index: {}]
  %s6 = inlined_call_operand.vmem [shape: f32[1,128], index: 6, kind: input, shape index: {}]
  %s7 = inlined_call_operand.hbm [shape: bf16[384,128], index: 7, kind: input, shape index: {}]
  %s8 = inlined_call_operand.vmem [shape: f32[1,128], index: 8, kind: input, shape index: {}]
  %s9 = inlined_call_operand.vmem [shape: f32[1,128], index: 9, kind: input, shape index: {}]
  %s10 = inlined_call_operand.vmem [shape: f32[1,128], index: 10, kind: input, shape index: {}]
  %s11 = inlined_call_operand.vmem [shape: f32[1,128], index: 11, kind: input, shape index: {}]
  %s12 = inlined_call_operand.<no memory space> [shape: f32[1,1], index: 12, kind: input, shape index: {}]
  %s13 = inlined_call_operand.hbm [shape: f32[256,128], index: 13, kind: input, shape index: {}]
  %s14 = inlined_call_operand.hbm [shape: f32[32,128], index: 14, kind: output, shape index: {0}]
  %s15 = inlined_call_operand.vmem [shape: f32[32,1], index: 15, kind: output, shape index: {1}]
  %16 = xla_tuple %s14, %s15
  %s17 = sld [smem:[#allocation0]]
  $region109: #{tpu_custom_call.1} parent=0
    _
  %s19 = ssub.s32 1, %s17
  %s20 = scalar_select 0, %s19, %s17
  %v21 = vstv %s12
  %22 = vst [vmem:[#allocation3] sm:$0x1] %v21
  $region1: #{tpu_custom_call.1} parent=0
    #allocation4 [shape = 'u8[98304]{0}', space=vmem, size = 0x18000, scoped, tag = 'input window, operand 3, single buffered']
    #allocation5 [shape = 's32[2]{0}', space=sflag, size = 0x8, scoped, tag = 'scoped memory for tpu_custom_call.1']
    #allocation6 [shape = 's32[2]{0}', space=sflag, size = 0x8, scoped, tag = 'scoped memory for tpu_custom_call.1']
    #allocation7 [shape = 'u8[98304]{0}', space=vmem, size = 0x18000, scoped, tag = 'input window, operand 7, single buffered']
    #allocation8 [shape = 's32[1]{0}', space=sflag, size = 0x4, scoped, tag = 'scoped memory for tpu_custom_call.1']
    #allocation9 [shape = 'u8[131072]{0}', space=vmem, size = 0x20000, scoped, tag = 'input window, operand 13, single buffered']
    #allocation10 [shape = 'u8[16384]{0}', space=vmem, size = 0x4000, scoped, tag = 'output window, operand 0']
    %23 = vsyncpa [#allocation5], 0
    %24 = vsyncpa [#allocation8], 0
    %25 = vsyncpa [#allocation6], 0
    %s26 = scalar_lea.sflag [#allocation6], 1
    %27 = vsyncpa %s26, 0
    loop: start=0, step=1, limit=4
    $region2: #{tpu_custom_call.1} parent=1 // loop_pre_header
      _
    $region3: #{tpu_custom_call.1} parent=1 // loop_header
      %s29 = sphi 0, %s33
      %p30 = scmp.ge.s32.totalorder %s29, 4
      %s39 = sphi 0, %s41
      %s42 = sphi 0, %s39
      %s43 = sphi 0, %s42
      %s59 = sphi 0, %s43
      %s63 = sphi 0, %s63
      %s65 = sphi 0, %s63
      %s66 = sphi 0, %s65
      %s80 = sphi 0, %s66
      %s84 = sphi 0, %s84
      %s86 = sphi 0, %s84
      %s87 = sphi 0, %s86
      %s101 = sphi 0, %s87
      %s105 = sphi 0, %s105
      %s107 = sphi 0, %s105
      %s108 = sphi 0, %s107
      %s122 = sphi 0, %s108
      %s126 = sphi 0, %s126
      %s128 = sphi 0, %s126
      %s129 = sphi 0, %s128
      %s143 = sphi 0, %s129
      %s147 = sphi 0, %s147
      %s149 = sphi 0, %s147
      %s150 = sphi 0, %s149
      %s164 = sphi 0, %s150
      %s168 = sphi 0, %s168
      %s170 = sphi 0, %s168
      %s171 = sphi 0, %s170
      %s185 = sphi 0, %s171
      %s189 = sphi 0, %s189
      %s191 = sphi 0, %s189
      %s192 = sphi 0, %s191
      %s206 = sphi 0, %s192
      %s210 = sphi 0, %s210
      %s212 = sphi 0, %s210
      %s213 = sphi 0, %s212
      %s227 = sphi 0, %s213
      %s231 = sphi 0, %s231
      %s233 = sphi 0, %s231
      %s234 = sphi 0, %s233
      %s248 = sphi 0, %s234
      %s252 = sphi 0, %s252
      %s254 = sphi 0, %s252
      %s255 = sphi 0, %s254
      %s269 = sphi 0, %s255
      %s273 = sphi 0, %s273
      %s275 = sphi 0, %s273
      %s276 = sphi 0, %s275
      %s290 = sphi 0, %s276
      %s294 = sphi 0, %s294
      %s296 = sphi 0, %s294
      %s297 = sphi 0, %s296
      %s311 = sphi 0, %s297
      %s315 = sphi 0, %s315
      %s317 = sphi 0, %s315
      %s318 = sphi 0, %s317
      %s332 = sphi 0, %s318
      %s338 = sphi 0, %s340
      %s341 = sphi 0, %s338
      %s342 = sphi 0, %s341
      %s358 = sphi 0, %s342
      %s364 = sphi 0, %s366
      %s367 = sphi 0, %s364
      %s368 = sphi 0, %s367
      %s384 = sphi 0, %s368
    $region4: #{tpu_custom_call.1} parent=1 // loop_header_branch
      %32 = sbr.rel (%p30) target = $region8
    $region5: #{tpu_custom_call.1} parent=1 // loop_body
      %s34 = ssub.s32 %s29, 1
      %s35 = ssub.s32 %s29, 2
      %s36 = sadd.s32 %s29, 1
      %s37 = ssub.s32 %s29, %s36
      %p38 = scmp.eq.s32.totalorder %s37, 0
      %s40 = sadd.s32 %s39, 1
      %s41 = scalar_select %p38, %s39, %s40
      %p44 = pneg %p38
      %p45 = scmp.eq.s32.totalorder %s29, 1
      %p46 = por %p44, %p45
      %p47 = scmp.ne.s32.totalorder %s39, %s42
      %p48 = scmp.eq.s32.totalorder %s29, 0
      %p49 = por %p47, %p48
      %p50 = scmp.ne.s32.totalorder %s39, %s42
      %p51 = scmp.eq.s32.totalorder %s34, 1
      %p52 = por %p50, %p51
      %p53 = scmp.ne.s32.totalorder %s42, %s43
      %p54 = scmp.eq.s32.totalorder %s34, 0
      %p55 = por %p53, %p54
      %p56 = scmp.ne.s32.totalorder %s42, %s43
      %p57 = scmp.eq.s32.totalorder %s35, 1
      %p58 = por %p56, %p57
      %p60 = scmp.ne.s32.totalorder %s43, %s59
      %p61 = scmp.eq.s32.totalorder %s35, 0
      %p62 = por %p60, %p61
      %s64 = sadd.s32 %s63, 1
      %p67 = scmp.eq.s32.totalorder %s29, 1
      %p68 = scmp.ne.s32.totalorder %s63, %s65
      %p69 = scmp.eq.s32.totalorder %s29, 0
      %p70 = por %p68, %p69
      %p71 = scmp.ne.s32.totalorder %s63, %s65
      %p72 = scmp.eq.s32.totalorder %s34, 1
      %p73 = por %p71, %p72
      %p74 = scmp.ne.s32.totalorder %s65, %s66
      %p75 = scmp.eq.s32.totalorder %s34, 0
      %p76 = por %p74, %p75
      %p77 = scmp.ne.s32.totalorder %s65, %s66
      %p78 = scmp.eq.s32.totalorder %s35, 1
      %p79 = por %p77, %p78
      %p81 = scmp.ne.s32.totalorder %s66, %s80
      %p82 = scmp.eq.s32.totalorder %s35, 0
      %p83 = por %p81, %p82
      %s85 = sadd.s32 %s84, 1
      %p88 = scmp.eq.s32.totalorder %s29, 1
      %p89 = scmp.ne.s32.totalorder %s84, %s86
      %p90 = scmp.eq.s32.totalorder %s29, 0
      %p91 = por %p89, %p90
      %p92 = scmp.ne.s32.totalorder %s84, %s86
      %p93 = scmp.eq.s32.totalorder %s34, 1
      %p94 = por %p92, %p93
      %p95 = scmp.ne.s32.totalorder %s86, %s87
      %p96 = scmp.eq.s32.totalorder %s34, 0
      %p97 = por %p95, %p96
      %p98 = scmp.ne.s32.totalorder %s86, %s87
      %p99 = scmp.eq.s32.totalorder %s35, 1
      %p100 = por %p98, %p99
      %p102 = scmp.ne.s32.totalorder %s87, %s101
      %p103 = scmp.eq.s32.totalorder %s35, 0
      %p104 = por %p102, %p103
      %s106 = sadd.s32 %s105, 1
      %p109 = scmp.eq.s32.totalorder %s29, 1
      %p110 = scmp.ne.s32.totalorder %s105, %s107
      %p111 = scmp.eq.s32.totalorder %s29, 0
      %p112 = por %p110, %p111
      %p113 = scmp.ne.s32.totalorder %s105, %s107
      %p114 = scmp.eq.s32.totalorder %s34, 1
      %p115 = por %p113, %p114
      %p116 = scmp.ne.s32.totalorder %s107, %s108
      %p117 = scmp.eq.s32.totalorder %s34, 0
      %p118 = por %p116, %p117
      %p119 = scmp.ne.s32.totalorder %s107, %s108
      %p120 = scmp.eq.s32.totalorder %s35, 1
      %p121 = por %p119, %p120
      %p123 = scmp.ne.s32.totalorder %s108, %s122
      %p124 = scmp.eq.s32.totalorder %s35, 0
      %p125 = por %p123, %p124
      %s127 = sadd.s32 %s126, 1
      %p130 = scmp.eq.s32.totalorder %s29, 1
      %p131 = scmp.ne.s32.totalorder %s126, %s128
      %p132 = scmp.eq.s32.totalorder %s29, 0
      %p133 = por %p131, %p132
      %p134 = scmp.ne.s32.totalorder %s126, %s128
      %p135 = scmp.eq.s32.totalorder %s34, 1
      %p136 = por %p134, %p135
      %p137 = scmp.ne.s32.totalorder %s128, %s129
      %p138 = scmp.eq.s32.totalorder %s34, 0
      %p139 = por %p137, %p138
      %p140 = scmp.ne.s32.totalorder %s128, %s129
      %p141 = scmp.eq.s32.totalorder %s35, 1
      %p142 = por %p140, %p141
      %p144 = scmp.ne.s32.totalorder %s129, %s143
      %p145 = scmp.eq.s32.totalorder %s35, 0
      %p146 = por %p144, %p145
      %s148 = sadd.s32 %s147, 1
      %p151 = scmp.eq.s32.totalorder %s29, 1
      %p152 = scmp.ne.s32.totalorder %s147, %s149
      %p153 = scmp.eq.s32.totalorder %s29, 0
      %p154 = por %p152, %p153
      %p155 = scmp.ne.s32.totalorder %s147, %s149
      %p156 = scmp.eq.s32.totalorder %s34, 1
      %p157 = por %p155, %p156
      %p158 = scmp.ne.s32.totalorder %s149, %s150
      %p159 = scmp.eq.s32.totalorder %s34, 0
      %p160 = por %p158, %p159
      %p161 = scmp.ne.s32.totalorder %s149, %s150
      %p162 = scmp.eq.s32.totalorder %s35, 1
      %p163 = por %p161, %p162
      %p165 = scmp.ne.s32.totalorder %s150, %s164
      %p166 = scmp.eq.s32.totalorder %s35, 0
      %p167 = por %p165, %p166
      %s169 = sadd.s32 %s168, 1
      %p172 = scmp.eq.s32.totalorder %s29, 1
      %p173 = scmp.ne.s32.totalorder %s168, %s170
      %p174 = scmp.eq.s32.totalorder %s29, 0
      %p175 = por %p173, %p174
      %p176 = scmp.ne.s32.totalorder %s168, %s170
      %p177 = scmp.eq.s32.totalorder %s34, 1
      %p178 = por %p176, %p177
      %p179 = scmp.ne.s32.totalorder %s170, %s171
      %p180 = scmp.eq.s32.totalorder %s34, 0
      %p181 = por %p179, %p180
      %p182 = scmp.ne.s32.totalorder %s170, %s171
      %p183 = scmp.eq.s32.totalorder %s35, 1
      %p184 = por %p182, %p183
      %p186 = scmp.ne.s32.totalorder %s171, %s185
      %p187 = scmp.eq.s32.totalorder %s35, 0
      %p188 = por %p186, %p187
      %s190 = sadd.s32 %s189, 1
      %p193 = scmp.eq.s32.totalorder %s29, 1
      %p194 = scmp.ne.s32.totalorder %s189, %s191
      %p195 = scmp.eq.s32.totalorder %s29, 0
      %p196 = por %p194, %p195
      %p197 = scmp.ne.s32.totalorder %s189, %s191
      %p198 = scmp.eq.s32.totalorder %s34, 1
      %p199 = por %p197, %p198
      %p200 = scmp.ne.s32.totalorder %s191, %s192
      %p201 = scmp.eq.s32.totalorder %s34, 0
      %p202 = por %p200, %p201
      %p203 = scmp.ne.s32.totalorder %s191, %s192
      %p204 = scmp.eq.s32.totalorder %s35, 1
      %p205 = por %p203, %p204
      %p207 = scmp.ne.s32.totalorder %s192, %s206
      %p208 = scmp.eq.s32.totalorder %s35, 0
      %p209 = por %p207, %p208
      %s211 = sadd.s32 %s210, 1
      %p214 = scmp.eq.s32.totalorder %s29, 1
      %p215 = scmp.ne.s32.totalorder %s210, %s212
      %p216 = scmp.eq.s32.totalorder %s29, 0
      %p217 = por %p215, %p216
      %p218 = scmp.ne.s32.totalorder %s210, %s212
      %p219 = scmp.eq.s32.totalorder %s34, 1
      %p220 = por %p218, %p219
      %p221 = scmp.ne.s32.totalorder %s212, %s213
      %p222 = scmp.eq.s32.totalorder %s34, 0
      %p223 = por %p221, %p222
      %p224 = scmp.ne.s32.totalorder %s212, %s213
      %p225 = scmp.eq.s32.totalorder %s35, 1
      %p226 = por %p224, %p225
      %p228 = scmp.ne.s32.totalorder %s213, %s227
      %p229 = scmp.eq.s32.totalorder %s35, 0
      %p230 = por %p228, %p229
      %s232 = sadd.s32 %s231, 1
      %p235 = scmp.eq.s32.totalorder %s29, 1
      %p236 = scmp.ne.s32.totalorder %s231, %s233
      %p237 = scmp.eq.s32.totalorder %s29, 0
      %p238 = por %p236, %p237
      %p239 = scmp.ne.s32.totalorder %s231, %s233
      %p240 = scmp.eq.s32.totalorder %s34, 1
      %p241 = por %p239, %p240
      %p242 = scmp.ne.s32.totalorder %s233, %s234
      %p243 = scmp.eq.s32.totalorder %s34, 0
      %p244 = por %p242, %p243
      %p245 = scmp.ne.s32.totalorder %s233, %s234
      %p246 = scmp.eq.s32.totalorder %s35, 1
      %p247 = por %p245, %p246
      %p249 = scmp.ne.s32.totalorder %s234, %s248
      %p250 = scmp.eq.s32.totalorder %s35, 0
      %p251 = por %p249, %p250
      %s253 = sadd.s32 %s252, 1
      %p256 = scmp.eq.s32.totalorder %s29, 1
      %p257 = scmp.ne.s32.totalorder %s252, %s254
      %p258 = scmp.eq.s32.totalorder %s29, 0
      %p259 = por %p257, %p258
      %p260 = scmp.ne.s32.totalorder %s252, %s254
      %p261 = scmp.eq.s32.totalorder %s34, 1
      %p262 = por %p260, %p261
      %p263 = scmp.ne.s32.totalorder %s254, %s255
      %p264 = scmp.eq.s32.totalorder %s34, 0
      %p265 = por %p263, %p264
      %p266 = scmp.ne.s32.totalorder %s254, %s255
      %p267 = scmp.eq.s32.totalorder %s35, 1
      %p268 = por %p266, %p267
      %p270 = scmp.ne.s32.totalorder %s255, %s269
      %p271 = scmp.eq.s32.totalorder %s35, 0
      %p272 = por %p270, %p271
      %s274 = sadd.s32 %s273, 1
      %p277 = scmp.eq.s32.totalorder %s29, 1
      %p278 = scmp.ne.s32.totalorder %s273, %s275
      %p279 = scmp.eq.s32.totalorder %s29, 0
      %p280 = por %p278, %p279
      %p281 = scmp.ne.s32.totalorder %s273, %s275
      %p282 = scmp.eq.s32.totalorder %s34, 1
      %p283 = por %p281, %p282
      %p284 = scmp.ne.s32.totalorder %s275, %s276
      %p285 = scmp.eq.s32.totalorder %s34, 0
      %p286 = por %p284, %p285
      %p287 = scmp.ne.s32.totalorder %s275, %s276
      %p288 = scmp.eq.s32.totalorder %s35, 1
      %p289 = por %p287, %p288
      %p291 = scmp.ne.s32.totalorder %s276, %s290
      %p292 = scmp.eq.s32.totalorder %s35, 0
      %p293 = por %p291, %p292
      %s295 = sadd.s32 %s294, 1
      %p298 = scmp.eq.s32.totalorder %s29, 1
      %p299 = scmp.ne.s32.totalorder %s294, %s296
      %p300 = scmp.eq.s32.totalorder %s29, 0
      %p301 = por %p299, %p300
      %p302 = scmp.ne.s32.totalorder %s294, %s296
      %p303 = scmp.eq.s32.totalorder %s34, 1
      %p304 = por %p302, %p303
      %p305 = scmp.ne.s32.totalorder %s296, %s297
      %p306 = scmp.eq.s32.totalorder %s34, 0
      %p307 = por %p305, %p306
      %p308 = scmp.ne.s32.totalorder %s296, %s297
      %p309 = scmp.eq.s32.totalorder %s35, 1
      %p310 = por %p308, %p309
      %p312 = scmp.ne.s32.totalorder %s297, %s311
      %p313 = scmp.eq.s32.totalorder %s35, 0
      %p314 = por %p312, %p313
      %s316 = sadd.s32 %s315, 1
      %p319 = scmp.eq.s32.totalorder %s29, 1
      %p320 = scmp.ne.s32.totalorder %s315, %s317
      %p321 = scmp.eq.s32.totalorder %s29, 0
      %p322 = por %p320, %p321
      %p323 = scmp.ne.s32.totalorder %s315, %s317
      %p324 = scmp.eq.s32.totalorder %s34, 1
      %p325 = por %p323, %p324
      %p326 = scmp.ne.s32.totalorder %s317, %s318
      %p327 = scmp.eq.s32.totalorder %s34, 0
      %p328 = por %p326, %p327
      %p329 = scmp.ne.s32.totalorder %s317, %s318
      %p330 = scmp.eq.s32.totalorder %s35, 1
      %p331 = por %p329, %p330
      %p333 = scmp.ne.s32.totalorder %s318, %s332
      %p334 = scmp.eq.s32.totalorder %s35, 0
      %p335 = por %p333, %p334
      %s336 = ssub.s32 %s29, %s36
      %p337 = scmp.eq.s32.totalorder %s336, 0
      %s339 = sadd.s32 %s338, 1
      %s340 = scalar_select %p337, %s338, %s339
      %p343 = pneg %p337
      %p344 = scmp.eq.s32.totalorder %s29, 1
      %p345 = por %p343, %p344
      %p346 = scmp.ne.s32.totalorder %s338, %s341
      %p347 = scmp.eq.s32.totalorder %s29, 0
      %p348 = por %p346, %p347
      %p349 = scmp.ne.s32.totalorder %s338, %s341
      %p350 = scmp.eq.s32.totalorder %s34, 1
      %p351 = por %p349, %p350
      %p352 = scmp.ne.s32.totalorder %s341, %s342
      %p353 = scmp.eq.s32.totalorder %s34, 0
      %p354 = por %p352, %p353
      %p355 = scmp.ne.s32.totalorder %s341, %s342
      %p356 = scmp.eq.s32.totalorder %s35, 1
      %p357 = por %p355, %p356
      %p359 = scmp.ne.s32.totalorder %s342, %s358
      %p360 = scmp.eq.s32.totalorder %s35, 0
      %p361 = por %p359, %p360
      %s362 = ssub.s32 %s29, %s36
      %p363 = scmp.eq.s32.totalorder %s362, 0
      %s365 = sadd.s32 %s364, 1
      %s366 = scalar_select %p363, %s364, %s365
      %p369 = pneg %p363
      %p370 = scmp.eq.s32.totalorder %s29, 1
      %p371 = por %p369, %p370
      %p372 = scmp.ne.s32.totalorder %s364, %s367
      %p373 = scmp.eq.s32.totalorder %s29, 0
      %p374 = por %p372, %p373
      %p375 = scmp.ne.s32.totalorder %s364, %s367
      %p376 = scmp.eq.s32.totalorder %s34, 1
      %p377 = por %p375, %p376
      %p378 = scmp.ne.s32.totalorder %s367, %s368
      %p379 = scmp.eq.s32.totalorder %s34, 0
      %p380 = por %p378, %p379
      %p381 = scmp.ne.s32.totalorder %s367, %s368
      %p382 = scmp.eq.s32.totalorder %s35, 1
      %p383 = por %p381, %p382
      %p385 = scmp.ne.s32.totalorder %s368, %s384
      %p386 = scmp.eq.s32.totalorder %s35, 0
      %p387 = por %p385, %p386
      %p388 = scmp.le.s32.totalorder 1, %s29
      %p389 = scmp.lt.s32.totalorder %s29, 3
      %p390 = pnand %p388, %p389
      %p391 = pneg %p390
      // Predicated region
      $region9: #{tpu_custom_call.1} parent=5 // pred_check
        _
      $region10: #{tpu_custom_call.1} parent=5 // pred_check_branch
        %393 = sbr.rel (%p390) target = $region12
      $region11: #{tpu_custom_call.1} parent=5 // pred_region
        %s394 = ssub.s32 %s29, 1
        // Predicated region
        $region13: #{tpu_custom_call.1} parent=11 // pred_check
          %p395 = pneg %p76
        $region14: #{tpu_custom_call.1} parent=11 // pred_check_branch
          %397 = sbr.rel (%p395) target = $region16
        $region15: #{tpu_custom_call.1} parent=11 // pred_region
          _
        $region16: #{tpu_custom_call.1} parent=11 // pred_fallthru
          _
        // Predicated region
        $region17: #{tpu_custom_call.1} parent=11 // pred_check
          %p398 = pneg %p97
        $region18: #{tpu_custom_call.1} parent=11 // pred_check_branch
          %400 = sbr.rel (%p398) target = $region20
        $region19: #{tpu_custom_call.1} parent=11 // pred_region
          _
        $region20: #{tpu_custom_call.1} parent=11 // pred_fallthru
          _
        // Predicated region
        $region21: #{tpu_custom_call.1} parent=11 // pred_check
          %p401 = pneg %p118
        $region22: #{tpu_custom_call.1} parent=11 // pred_check_branch
          %403 = sbr.rel (%p401) target = $region24
        $region23: #{tpu_custom_call.1} parent=11 // pred_region
          %s405 = ssub.s32 3072, 3072
          %406 = vsyncadd [#allocation5], %s405
          %s407 = sshll.u32 [#allocation4], 4
          %s408 = int_to_ptr.vmem [resolvable:$true] %s407
          %413 = dma.hbm_to_vmem [thread:$0]  %s3, 3072, %s408, [#allocation5], 64, 64, 4
        $region24: #{tpu_custom_call.1} parent=11 // pred_fallthru
          _
        // Predicated region
        $region25: #{tpu_custom_call.1} parent=11 // pred_check
          %p414 = pneg %p139
        $region26: #{tpu_custom_call.1} parent=11 // pred_check_branch
          %416 = sbr.rel (%p414) target = $region28
        $region27: #{tpu_custom_call.1} parent=11 // pred_region
          _
        $region28: #{tpu_custom_call.1} parent=11 // pred_fallthru
          _
        // Predicated region
        $region29: #{tpu_custom_call.1} parent=11 // pred_check
          %p417 = pneg %p160
        $region30: #{tpu_custom_call.1} parent=11 // pred_check_branch
          %419 = sbr.rel (%p417) target = $region32
        $region31: #{tpu_custom_call.1} parent=11 // pred_region
          _
        $region32: #{tpu_custom_call.1} parent=11 // pred_fallthru
          _
        // Predicated region
        $region33: #{tpu_custom_call.1} parent=11 // pred_check
          %p420 = pneg %p181
        $region34: #{tpu_custom_call.1} parent=11 // pred_check_branch
          %422 = sbr.rel (%p420) target = $region36
        $region35: #{tpu_custom_call.1} parent=11 // pred_region
          _
        $region36: #{tpu_custom_call.1} parent=11 // pred_fallthru
          _
        // Predicated region
        $region37: #{tpu_custom_call.1} parent=11 // pred_check
          %p423 = pneg %p202
        $region38: #{tpu_custom_call.1} parent=11 // pred_check_branch
          %425 = sbr.rel (%p423) target = $region40
        $region39: #{tpu_custom_call.1} parent=11 // pred_region
          %s427 = ssub.s32 3072, 3072
          %428 = vsyncadd [#allocation8], %s427
          %s429 = sshll.u32 [#allocation7], 4
          %s430 = int_to_ptr.vmem [resolvable:$true] %s429
          %435 = dma.hbm_to_vmem [thread:$0]  %s7, 3072, %s430, [#allocation8], 64, 64, 4
        $region40: #{tpu_custom_call.1} parent=11 // pred_fallthru
          _
        // Predicated region
        $region41: #{tpu_custom_call.1} parent=11 // pred_check
          %p436 = pneg %p223
        $region42: #{tpu_custom_call.1} parent=11 // pred_check_branch
          %438 = sbr.rel (%p436) target = $region44
        $region43: #{tpu_custom_call.1} parent=11 // pred_region
          _
        $region44: #{tpu_custom_call.1} parent=11 // pred_fallthru
          _
        // Predicated region
        $region45: #{tpu_custom_call.1} parent=11 // pred_check
          %p439 = pneg %p244
        $region46: #{tpu_custom_call.1} parent=11 // pred_check_branch
          %441 = sbr.rel (%p439) target = $region48
        $region47: #{tpu_custom_call.1} parent=11 // pred_region
          _
        $region48: #{tpu_custom_call.1} parent=11 // pred_fallthru
          _
        // Predicated region
        $region49: #{tpu_custom_call.1} parent=11 // pred_check
          %p442 = pneg %p265
        $region50: #{tpu_custom_call.1} parent=11 // pred_check_branch
          %444 = sbr.rel (%p442) target = $region52
        $region51: #{tpu_custom_call.1} parent=11 // pred_region
          _
        $region52: #{tpu_custom_call.1} parent=11 // pred_fallthru
          _
        // Predicated region
        $region53: #{tpu_custom_call.1} parent=11 // pred_check
          %p445 = pneg %p286
        $region54: #{tpu_custom_call.1} parent=11 // pred_check_branch
          %447 = sbr.rel (%p445) target = $region56
        $region55: #{tpu_custom_call.1} parent=11 // pred_region
          _
        $region56: #{tpu_custom_call.1} parent=11 // pred_fallthru
          _
        // Predicated region
        $region57: #{tpu_custom_call.1} parent=11 // pred_check
          %p448 = pneg %p307
        $region58: #{tpu_custom_call.1} parent=11 // pred_check_branch
          %450 = sbr.rel (%p448) target = $region60
        $region59: #{tpu_custom_call.1} parent=11 // pred_region
          _
        $region60: #{tpu_custom_call.1} parent=11 // pred_fallthru
          _
        // Predicated region
        $region61: #{tpu_custom_call.1} parent=11 // pred_check
          %p451 = pneg %p328
        $region62: #{tpu_custom_call.1} parent=11 // pred_check_branch
          %453 = sbr.rel (%p451) target = $region64
        $region63: #{tpu_custom_call.1} parent=11 // pred_region
          %s455 = ssub.s32 4096, 4096
          %456 = vsyncadd [#allocation8], %s455
          %s457 = sshll.u32 [#allocation9], 4
          %s458 = int_to_ptr.vmem [resolvable:$true] %s457
          %463 = dma.hbm_to_vmem [thread:$0]  %s13, 4096, %s458, [#allocation8], 128, 128, 8
        $region64: #{tpu_custom_call.1} parent=11 // pred_fallthru
          _
      $region12: #{tpu_custom_call.1} parent=5 // pred_fallthru
        _
      %p464 = scmp.lt.s32.totalorder %s29, 2
      // Predicated region
      $region65: #{tpu_custom_call.1} parent=5 // pred_check
        %p465 = pneg %p464
      $region66: #{tpu_custom_call.1} parent=5 // pred_check_branch
        %467 = sbr.rel (%p465) target = $region68
      $region67: #{tpu_custom_call.1} parent=5 // pred_region
        // Predicated region
        $region69: #{tpu_custom_call.1} parent=67 // pred_check
          %p468 = pneg %p49
        $region70: #{tpu_custom_call.1} parent=67 // pred_check_branch
          %470 = sbr.rel (%p468) target = $region72
        $region71: #{tpu_custom_call.1} parent=67 // pred_region
          %s471 = smul.u32 2, %s29
          %p472 = scmp.lt.s32.totalorder %s471, 3
          %s473 = scalar_select %p472, %s471, 3
          %s474 = smul.addr %s473, 4
          %s475 = scalar_lea.vmem %s0, %s474
          %s476 = smul.u32 2, %s29
        $region72: #{tpu_custom_call.1} parent=67 // pred_fallthru
          _
      $region68: #{tpu_custom_call.1} parent=5 // pred_fallthru
        _
      %p477 = scmp.le.s32.totalorder 1, %s29
      %p478 = scmp.lt.s32.totalorder %s29, 3
      %p479 = pnand %p477, %p478
      %p480 = pneg %p479
      // Predicated region
      $region73: #{tpu_custom_call.1} parent=5 // pred_check
        _
      $region74: #{tpu_custom_call.1} parent=5 // pred_check_branch
        %482 = sbr.rel (%p479) target = $region76
      $region75: #{tpu_custom_call.1} parent=5 // pred_region
        %s483 = ssub.s32 %s29, 1
        // Predicated region
        $region77: #{tpu_custom_call.1} parent=75 // pred_check
          %p484 = pneg %p118
        $region78: #{tpu_custom_call.1} parent=75 // pred_check_branch
          %486 = sbr.rel (%p484) target = $region80
        $region79: #{tpu_custom_call.1} parent=75 // pred_region
          %487 = dma.done [#allocation5], 3072
        $region80: #{tpu_custom_call.1} parent=75 // pred_fallthru
          _
        // Predicated region
        $region81: #{tpu_custom_call.1} parent=75 // pred_check
          %p488 = pneg %p202
        $region82: #{tpu_custom_call.1} parent=75 // pred_check_branch
          %490 = sbr.rel (%p488) target = $region84
        $region83: #{tpu_custom_call.1} parent=75 // pred_region
          %491 = dma.done [#allocation8], 3072
        $region84: #{tpu_custom_call.1} parent=75 // pred_fallthru
          _
        // Predicated region
        $region85: #{tpu_custom_call.1} parent=75 // pred_check
          %p492 = pneg %p328
        $region86: #{tpu_custom_call.1} parent=75 // pred_check_branch
          %494 = sbr.rel (%p492) target = $region88
        $region87: #{tpu_custom_call.1} parent=75 // pred_region
          %495 = dma.done [#allocation8], 4096
        $region88: #{tpu_custom_call.1} parent=75 // pred_fallthru
          _
        %s496 = smul.u32 2, %s34
        %p497 = scmp.lt.s32.totalorder %s496, 3
        %s498 = scalar_select %p497, %s496, 3
        %s499 = smul.addr %s498, 4
        %s500 = scalar_lea.vmem %s0, %s499
        %p501 = pneg %p55
        %p502 = pneg %p52
        %p503 = pneg %p76
        %p504 = pneg %p73
        %p505 = pneg %p97
        %p506 = pneg %p94
        %p507 = pneg %p118
        %p508 = pneg %p115
        %p509 = pneg %p139
        %p510 = pneg %p136
        %p511 = pneg %p160
        %p512 = pneg %p157
        %p513 = pneg %p181
        %p514 = pneg %p178
        %p515 = pneg %p202
        %p516 = pneg %p199
        %p517 = pneg %p223
        %p518 = pneg %p220
        %p519 = pneg %p244
        %p520 = pneg %p241
        %p521 = pneg %p265
        %p522 = pneg %p262
        %p523 = pneg %p286
        %p524 = pneg %p283
        %p525 = pneg %p307
        %p526 = pneg %p304
        %p527 = pneg %p328
        %p528 = pneg %p325
        %p529 = pneg %p354
        %p530 = pneg %p351
        %s531 = sand.u32 %s341, 1
        %s532 = scalar_lea.sflag [#allocation6], %s531
        %s533 = sand.u32 %s341, 1
        %s534 = smul.addr %s533, 16
        %s535 = scalar_lea.vmem [#allocation10], %s534
        %p536 = pneg %p380
        %p537 = pneg %p377
        %s538 = smul.u32 2, %s34
        %p539 = scmp.lt.s32.totalorder %s538, 3
        %s540 = scalar_select %p539, %s538, 3
        %s541 = smul.addr %s540, 8
        %s542 = scalar_lea.vmem %s15, %s541
        %s543 = smul.u32 2, %s34
        %p544 = scmp.lt.s32.totalorder %s543, 3
        %s545 = scalar_select %p544, %s543, 3
        %s546 = smul.addr %s545, 4
        %s547 = scalar_lea.vmem %s0, %s546
        %s548 = smul.u32 2, %s34
        %s549 = smul.u32 2, %s34
        %s550 = smul.u32 2, %s34
        %p551 = scmp.lt.s32.totalorder %s550, 3
        %s552 = scalar_select %p551, %s550, 3
        %s553 = smul.addr %s552, 8
        %s554 = scalar_lea.vmem %s15, %s553
        %s555 = smul.u32 2, %s34
        %v557 = vld [vmem:[%s547] sm:$0xf]
        %v558 = vld [vmem:[%s547 + $0x4] sm:$0xf]
        %v559 = vld [vmem:[%s1] sm:$0xff]
        %v560 = vld [vmem:[%s1 + $0x8] sm:$0xff]
        %v561 = vld [vmem:[%s2] sm:$0xff]
        %v562 = vld [vmem:[%s2 + $0x8] sm:$0xff]
        %563 = vst [vmem:[#allocation2] sm:$0xff] 0.0
        %564 = vst [vmem:[#allocation2 + $0x18] sm:$0xff] 0.0
        %v565 = vlaneseq
        %v566 = vand.u32 %v565, 127
        %vm567 = vcmp.lt.s32.totalorder %v566, 32
        %v568 = vunpack.c.l.bf16 %v557
        %v569 = vunpack.c.l.bf16 %v558
        %570 = vst [vmem:[#allocation2 + $0x8] sm:$0xff] %v568
        %571 = vst [vmem:[#allocation2 + $0x10] sm:$0xff] %v569
        %v572 = vld [vmem:[#allocation2 + $0x7] sm:$0xff]
        %v573 = vld [vmem:[#allocation2 + $0xf] sm:$0xff]
        %v574 = vpack.c.bf16 %v573, %v572
        %v575 = vld [vmem:[#allocation2 + $0x9] sm:$0xff]
        %v576 = vld [vmem:[#allocation2 + $0x11] sm:$0xff]
        %v577 = vpack.c.bf16 %v576, %v575
        %v578 = vld [vmem:[#allocation4 + $0x40] sm:$0xf]
        %v579 = vld [vmem:[#allocation4 + $0x44] sm:$0xf]
        %v580 = vld [vmem:[#allocation4 + $0x48] sm:$0xf]
        %v581 = vld [vmem:[#allocation4 + $0x4c] sm:$0xf]
        %v582 = vld [vmem:[#allocation4 + $0x50] sm:$0xf]
        %v583 = vld [vmem:[#allocation4 + $0x54] sm:$0xf]
        %v584 = vld [vmem:[#allocation4 + $0x58] sm:$0xf]
        %v585 = vld [vmem:[#allocation4 + $0x5c] sm:$0xf]
        %v586 = vld [vmem:[#allocation4 + $0x60] sm:$0xf]
        %v587 = vld [vmem:[#allocation4 + $0x64] sm:$0xf]
        %v588 = vld [vmem:[#allocation4 + $0x68] sm:$0xf]
        %v589 = vld [vmem:[#allocation4 + $0x6c] sm:$0xf]
        %v590 = vld [vmem:[#allocation4 + $0x70] sm:$0xf]
        %v591 = vld [vmem:[#allocation4 + $0x74] sm:$0xf]
        %v592 = vld [vmem:[#allocation4 + $0x78] sm:$0xf]
        %v593 = vld [vmem:[#allocation4 + $0x7c] sm:$0xf]
        %v594 = vld [vmem:[#allocation4] sm:$0xf]
        %v595 = vld [vmem:[#allocation4 + $0x4] sm:$0xf]
        %v596 = vld [vmem:[#allocation4 + $0x8] sm:$0xf]
        %v597 = vld [vmem:[#allocation4 + $0xc] sm:$0xf]
        %v598 = vld [vmem:[#allocation4 + $0x10] sm:$0xf]
        %v599 = vld [vmem:[#allocation4 + $0x14] sm:$0xf]
        %v600 = vld [vmem:[#allocation4 + $0x18] sm:$0xf]
        %v601 = vld [vmem:[#allocation4 + $0x1c] sm:$0xf]
        %v602 = vld [vmem:[#allocation4 + $0x20] sm:$0xf]
        %v603 = vld [vmem:[#allocation4 + $0x24] sm:$0xf]
        %v604 = vld [vmem:[#allocation4 + $0x28] sm:$0xf]
        %v605 = vld [vmem:[#allocation4 + $0x2c] sm:$0xf]
        %v606 = vld [vmem:[#allocation4 + $0x30] sm:$0xf]
        %v607 = vld [vmem:[#allocation4 + $0x34] sm:$0xf]
        %v608 = vld [vmem:[#allocation4 + $0x38] sm:$0xf]
        %v609 = vld [vmem:[#allocation4 + $0x3c] sm:$0xf]
        %v626 = vunpack.c.l.b16 %v594
        %v627 = vunpack.c.l.b16 %v595
        %v628 = vunpack.c.l.b16 %v596
        %v629 = vunpack.c.l.b16 %v597
        %v630 = vunpack.c.l.b16 %v598
        %v631 = vunpack.c.l.b16 %v599
        %v632 = vunpack.c.l.b16 %v600
        %v633 = vunpack.c.l.b16 %v601
        %v634 = vunpack.c.l.b16 %v602
        %v635 = vunpack.c.l.b16 %v603
        %v636 = vunpack.c.l.b16 %v604
        %v637 = vunpack.c.l.b16 %v605
        %v638 = vunpack.c.l.b16 %v606
        %v639 = vunpack.c.l.b16 %v607
        %v640 = vunpack.c.l.b16 %v608
        %v641 = vunpack.c.l.b16 %v609
        %v642 = vpack.c.b16 %v627, %v626
        %v643 = vpack.c.b16 %v629, %v628
        %v644 = vpack.c.b16 %v631, %v630
        %v645 = vpack.c.b16 %v633, %v632
        %v646 = vpack.c.b16 %v635, %v634
        %v647 = vpack.c.b16 %v637, %v636
        %v648 = vpack.c.b16 %v639, %v638
        %v649 = vpack.c.b16 %v641, %v640
        %658 = vmatprep.subr.bf16.mxu0 0
        %659 = vmatpush1.bf16.msra.mxu0 %v642
        %660 = vmatprep.subr.bf16.mxu0 0
        %661 = vmatpush1.bf16.msra.mxu0 %v643
        %662 = vmatprep.subr.bf16.mxu0 0
        %663 = vmatpush1.bf16.msra.mxu0 %v644
        %664 = vmatprep.subr.bf16.mxu0 0
        %665 = vmatpush1.bf16.msra.mxu0 %v645
        %666 = vmatprep.subr.bf16.mxu0 0
        %667 = vmatpush1.bf16.msra.mxu0 %v646
        %668 = vmatprep.subr.bf16.mxu0 0
        %669 = vmatpush1.bf16.msra.mxu0 %v647
        %670 = vmatprep.subr.bf16.mxu0 0
        %671 = vmatpush1.bf16.msra.mxu0 %v648
        %672 = vmatprep.subr.bf16.mxu0 0
        %673 = vmatpush1.bf16.msra.mxu0 %v649
        %674 = vmatprep.subr.bf16.mxu0 0
        %675 = vmatpush1.bf16.msra.mxu0 0
        %676 = vmatprep.subr.bf16.mxu0 0
        %677 = vmatpush1.bf16.msra.mxu0 0
        %678 = vmatprep.subr.bf16.mxu0 0
        %679 = vmatpush1.bf16.msra.mxu0 0
        %680 = vmatprep.subr.bf16.mxu0 0
        %681 = vmatpush1.bf16.msra.mxu0 0
        %682 = vmatprep.subr.bf16.mxu0 0
        %683 = vmatpush1.bf16.msra.mxu0 0
        %684 = vmatprep.subr.bf16.mxu0 0
        %685 = vmatpush1.bf16.msra.mxu0 0
        %686 = vmatprep.subr.bf16.mxu0 0
        %687 = vmatpush1.bf16.msra.mxu0 0
        %688 = vmatprep.subr.bf16.mxu0 0
        %689 = vmatpush1.bf16.msra.mxu0 0
        %690 = vmatprep.mubr.bf16.mxu0 0
        %691 = vmatmul.mubr.bf16.gmra.mrb[0].mxu0 %v574
        %v692 = vpop.f32.mrb[0].mxu0
        %v693 = vadd.f32 0.0, %v692
        %v694 = vpop.f32.mrb[0].mxu0
        %v695 = vpop.f32.mrb[0].mxu0
        %v696 = vadd.f32 0.0, %v695
        %v697 = vpop.f32.mrb[0].mxu0
        %698 = vdwg.mxu0
        %700 = vset.pattern.permute.xlu0 0
        %701 = vperm.xlu0 %700, %v559
        %v702 = vpop.permute.xlu0 %701
        %705 = vset.pattern.permute.xlu0 0
        %706 = vperm.xlu0 %705, %v560
        %v707 = vpop.permute.xlu0 %706
        %v709 = vmul.f32 %v702, %v693
        %v710 = vmul.f32 %v707, %v696
        %v713 = vunpack.c.l.b16 %v557
        %v714 = vunpack.c.l.b16 %v558
        %v715 = vpack.c.b16 %v714, %v713
        %v733 = vunpack.c.l.b16 %v578
        %v734 = vunpack.c.l.b16 %v579
        %v735 = vunpack.c.l.b16 %v580
        %v736 = vunpack.c.l.b16 %v581
        %v737 = vunpack.c.l.b16 %v582
        %v738 = vunpack.c.l.b16 %v583
        %v739 = vunpack.c.l.b16 %v584
        %v740 = vunpack.c.l.b16 %v585
        %v741 = vunpack.c.l.b16 %v586
        %v742 = vunpack.c.l.b16 %v587
        %v743 = vunpack.c.l.b16 %v588
        %v744 = vunpack.c.l.b16 %v589
        %v745 = vunpack.c.l.b16 %v590
        %v746 = vunpack.c.l.b16 %v591
        %v747 = vunpack.c.l.b16 %v592
        %v748 = vunpack.c.l.b16 %v593
        %v749 = vpack.c.b16 %v734, %v733
        %v750 = vpack.c.b16 %v736, %v735
        %v751 = vpack.c.b16 %v738, %v737
        %v752 = vpack.c.b16 %v740, %v739
        %v753 = vpack.c.b16 %v742, %v741
        %v754 = vpack.c.b16 %v744, %v743
        %v755 = vpack.c.b16 %v746, %v745
        %v756 = vpack.c.b16 %v748, %v747
        %765 = vmatprep.subr.bf16.mxu0 0
        %766 = vmatpush1.bf16.msra.mxu0 %v749
        %767 = vmatprep.subr.bf16.mxu0 0
        %768 = vmatpush1.bf16.msra.mxu0 %v750
        %769 = vmatprep.subr.bf16.mxu0 0
        %770 = vmatpush1.bf16.msra.mxu0 %v751
        %771 = vmatprep.subr.bf16.mxu0 0
        %772 = vmatpush1.bf16.msra.mxu0 %v752
        %773 = vmatprep.subr.bf16.mxu0 0
        %774 = vmatpush1.bf16.msra.mxu0 %v753
        %775 = vmatprep.subr.bf16.mxu0 0
        %776 = vmatpush1.bf16.msra.mxu0 %v754
        %777 = vmatprep.subr.bf16.mxu0 0
        %778 = vmatpush1.bf16.msra.mxu0 %v755
        %779 = vmatprep.subr.bf16.mxu0 0
        %780 = vmatpush1.bf16.msra.mxu0 %v756
        %781 = vmatprep.subr.bf16.mxu0 0
        %782 = vmatpush1.bf16.msra.mxu0 0
        %783 = vmatprep.subr.bf16.mxu0 0
        %784 = vmatpush1.bf16.msra.mxu0 0
        %785 = vmatprep.subr.bf16.mxu0 0
        %786 = vmatpush1.bf16.msra.mxu0 0
        %787 = vmatprep.subr.bf16.mxu0 0
        %788 = vmatpush1.bf16.msra.mxu0 0
        %789 = vmatprep.subr.bf16.mxu0 0
        %790 = vmatpush1.bf16.msra.mxu0 0
        %791 = vmatprep.subr.bf16.mxu0 0
        %792 = vmatpush1.bf16.msra.mxu0 0
        %793 = vmatprep.subr.bf16.mxu0 0
        %794 = vmatpush1.bf16.msra.mxu0 0
        %795 = vmatprep.subr.bf16.mxu0 0
        %796 = vmatpush1.bf16.msra.mxu0 0
        %797 = vmatprep.mubr.bf16.mxu0 0
        %798 = vmatmul.mubr.bf16.gmra.mrb[0].mxu0 %v715
        %v799 = vpop.f32.mrb[0].mxu0
        %v800 = vadd.f32 %v709, %v799
        %v801 = vpop.f32.mrb[0].mxu0
        %v802 = vpop.f32.mrb[0].mxu0
        %v803 = vadd.f32 %v710, %v802
        %v804 = vpop.f32.mrb[0].mxu0
        %805 = vdwg.mxu0
        %v806 = vld [vmem:[#allocation4 + $0x80] sm:$0xf]
        %v807 = vld [vmem:[#allocation4 + $0x84] sm:$0xf]
        %v808 = vld [vmem:[#allocation4 + $0x88] sm:$0xf]
        %v809 = vld [vmem:[#allocation4 + $0x8c] sm:$0xf]
        %v810 = vld [vmem:[#allocation4 + $0x90] sm:$0xf]
        %v811 = vld [vmem:[#allocation4 + $0x94] sm:$0xf]
        %v812 = vld [vmem:[#allocation4 + $0x98] sm:$0xf]
        %v813 = vld [vmem:[#allocation4 + $0x9c] sm:$0xf]
        %v814 = vld [vmem:[#allocation4 + $0xa0] sm:$0xf]
        %v815 = vld [vmem:[#allocation4 + $0xa4] sm:$0xf]
        %v816 = vld [vmem:[#allocation4 + $0xa8] sm:$0xf]
        %v817 = vld [vmem:[#allocation4 + $0xac] sm:$0xf]
        %v818 = vld [vmem:[#allocation4 + $0xb0] sm:$0xf]
        %v819 = vld [vmem:[#allocation4 + $0xb4] sm:$0xf]
        %v820 = vld [vmem:[#allocation4 + $0xb8] sm:$0xf]
        %v821 = vld [vmem:[#allocation4 + $0xbc] sm:$0xf]
        %v838 = vunpack.c.l.b16 %v806
        %v839 = vunpack.c.l.b16 %v807
        %v840 = vunpack.c.l.b16 %v808
        %v841 = vunpack.c.l.b16 %v809
        %v842 = vunpack.c.l.b16 %v810
        %v843 = vunpack.c.l.b16 %v811
        %v844 = vunpack.c.l.b16 %v812
        %v845 = vunpack.c.l.b16 %v813
        %v846 = vunpack.c.l.b16 %v814
        %v847 = vunpack.c.l.b16 %v815
        %v848 = vunpack.c.l.b16 %v816
        %v849 = vunpack.c.l.b16 %v817
        %v850 = vunpack.c.l.b16 %v818
        %v851 = vunpack.c.l.b16 %v819
        %v852 = vunpack.c.l.b16 %v820
        %v853 = vunpack.c.l.b16 %v821
        %v854 = vpack.c.b16 %v839, %v838
        %v855 = vpack.c.b16 %v841, %v840
        %v856 = vpack.c.b16 %v843, %v842
        %v857 = vpack.c.b16 %v845, %v844
        %v858 = vpack.c.b16 %v847, %v846
        %v859 = vpack.c.b16 %v849, %v848
        %v860 = vpack.c.b16 %v851, %v850
        %v861 = vpack.c.b16 %v853, %v852
        %870 = vmatprep.subr.bf16.mxu0 0
        %871 = vmatpush1.bf16.msra.mxu0 %v854
        %872 = vmatprep.subr.bf16.mxu0 0
        %873 = vmatpush1.bf16.msra.mxu0 %v855
        %874 = vmatprep.subr.bf16.mxu0 0
        %875 = vmatpush1.bf16.msra.mxu0 %v856
        %876 = vmatprep.subr.bf16.mxu0 0
        %877 = vmatpush1.bf16.msra.mxu0 %v857
        %878 = vmatprep.subr.bf16.mxu0 0
        %879 = vmatpush1.bf16.msra.mxu0 %v858
        %880 = vmatprep.subr.bf16.mxu0 0
        %881 = vmatpush1.bf16.msra.mxu0 %v859
        %882 = vmatprep.subr.bf16.mxu0 0
        %883 = vmatpush1.bf16.msra.mxu0 %v860
        %884 = vmatprep.subr.bf16.mxu0 0
        %885 = vmatpush1.bf16.msra.mxu0 %v861
        %886 = vmatprep.subr.bf16.mxu0 0
        %887 = vmatpush1.bf16.msra.mxu0 0
        %888 = vmatprep.subr.bf16.mxu0 0
        %889 = vmatpush1.bf16.msra.mxu0 0
        %890 = vmatprep.subr.bf16.mxu0 0
        %891 = vmatpush1.bf16.msra.mxu0 0
        %892 = vmatprep.subr.bf16.mxu0 0
        %893 = vmatpush1.bf16.msra.mxu0 0
        %894 = vmatprep.subr.bf16.mxu0 0
        %895 = vmatpush1.bf16.msra.mxu0 0
        %896 = vmatprep.subr.bf16.mxu0 0
        %897 = vmatpush1.bf16.msra.mxu0 0
        %898 = vmatprep.subr.bf16.mxu0 0
        %899 = vmatpush1.bf16.msra.mxu0 0
        %900 = vmatprep.subr.bf16.mxu0 0
        %901 = vmatpush1.bf16.msra.mxu0 0
        %902 = vmatprep.mubr.bf16.mxu0 0
        %903 = vmatmul.mubr.bf16.gmra.mrb[0].mxu0 %v577
        %v904 = vpop.f32.mrb[0].mxu0
        %v905 = vadd.f32 0.0, %v904
        %v906 = vpop.f32.mrb[0].mxu0
        %v907 = vpop.f32.mrb[0].mxu0
        %v908 = vadd.f32 0.0, %v907
        %v909 = vpop.f32.mrb[0].mxu0
        %910 = vdwg.mxu0
        %912 = vset.pattern.permute.xlu0 0
        %913 = vperm.xlu0 %912, %v561
        %v914 = vpop.permute.xlu0 %913
        %917 = vset.pattern.permute.xlu0 0
        %918 = vperm.xlu0 %917, %v562
        %v919 = vpop.permute.xlu0 %918
        %v921 = vmul.f32 %v914, %v905
        %v922 = vmul.f32 %v919, %v908
        %v923 = vadd.f32 %v800, %v921
        %v924 = vadd.f32 %v803, %v922
        %v925 = vld [vmem:[%s4] sm:$0x1]
        %v927 = vlaneseq
        %v928 = vshrl.u32 %v927, 7
        %v929 = vsub.s32 0, %v928
        %v930 = vrot.slane %v925, %v929
        %v932 = vadd.f32 %v923, %v930
        %v933 = vadd.f32 %v924, %v930
        %v934 = vmax.f32 %v932, 0.0
        %v935 = vmax.f32 %v933, 0.0
        %936 = vadd.xlane.f32.xlu0 %v934
        %v937 = vpop.xlane.xlu0 %936
        %938 = vadd.xlane.f32.xlu0 %v935
        %v939 = vpop.xlane.xlu0 %938
        %v940 = vmul.f32 %v937, 0.03125
        %v941 = vmul.f32 %v939, 0.03125
        %v942 = vsub.f32 %v934, %v940
        %v943 = vsub.f32 %v935, %v941
        %v944 = vsel %vm567, %v942, 0.0
        %v945 = vsel %vm567, %v943, 0.0
        %v946 = vmul.f32 %v944, %v944
        %v947 = vmul.f32 %v945, %v945
        %948 = vadd.xlane.f32.xlu0 %v946
        %v949 = vpop.xlane.xlu0 %948
        %950 = vadd.xlane.f32.xlu0 %v947
        %v951 = vpop.xlane.xlu0 %950
        %v952 = vmul.f32 %v949, 0.03125
        %v953 = vmul.f32 %v951, 0.03125
        %v954 = vadd.f32 %v952, 1e-05
        %v955 = vadd.f32 %v953, 1e-05
        %v956 = vrsqrt.pop %v954
        %v957 = vrsqrt.pop %v955
        %v958 = vmul.f32 %v944, %v956
        %v959 = vmul.f32 %v945, %v957
        %v960 = vld [vmem:[%s5] sm:$0x1]
        %v962 = vlaneseq
        %v963 = vshrl.u32 %v962, 7
        %v964 = vsub.s32 0, %v963
        %v965 = vrot.slane %v960, %v964
        %v967 = vmul.f32 %v958, %v965
        %v968 = vmul.f32 %v959, %v965
        %v969 = vld [vmem:[%s6] sm:$0x1]
        %v971 = vlaneseq
        %v972 = vshrl.u32 %v971, 7
        %v973 = vsub.s32 0, %v972
        %v974 = vrot.slane %v969, %v973
        %v976 = vadd.f32 %v967, %v974
        %v977 = vadd.f32 %v968, %v974
        %v978 = vpack.c.bf16 %v977, %v976
        %979 = vst [vmem:[#allocation2 + $0x8] sm:$0xff] %v976
        %980 = vst [vmem:[#allocation2 + $0x10] sm:$0xff] %v977
        %v981 = vld [vmem:[#allocation2 + $0x7] sm:$0xff]
        %v982 = vld [vmem:[#allocation2 + $0xf] sm:$0xff]
        %v983 = vpack.c.bf16 %v982, %v981
        %v984 = vld [vmem:[#allocation2 + $0x9] sm:$0xff]
        %v985 = vld [vmem:[#allocation2 + $0x11] sm:$0xff]
        %v986 = vpack.c.bf16 %v985, %v984
        %v987 = vld [vmem:[#allocation7 + $0x40] sm:$0xf]
        %v988 = vld [vmem:[#allocation7 + $0x44] sm:$0xf]
        %v989 = vld [vmem:[#allocation7 + $0x48] sm:$0xf]
        %v990 = vld [vmem:[#allocation7 + $0x4c] sm:$0xf]
        %v991 = vld [vmem:[#allocation7 + $0x50] sm:$0xf]
        %v992 = vld [vmem:[#allocation7 + $0x54] sm:$0xf]
        %v993 = vld [vmem:[#allocation7 + $0x58] sm:$0xf]
        %v994 = vld [vmem:[#allocation7 + $0x5c] sm:$0xf]
        %v995 = vld [vmem:[#allocation7 + $0x60] sm:$0xf]
        %v996 = vld [vmem:[#allocation7 + $0x64] sm:$0xf]
        %v997 = vld [vmem:[#allocation7 + $0x68] sm:$0xf]
        %v998 = vld [vmem:[#allocation7 + $0x6c] sm:$0xf]
        %v999 = vld [vmem:[#allocation7 + $0x70] sm:$0xf]
        %v1000 = vld [vmem:[#allocation7 + $0x74] sm:$0xf]
        %v1001 = vld [vmem:[#allocation7 + $0x78] sm:$0xf]
        %v1002 = vld [vmem:[#allocation7 + $0x7c] sm:$0xf]
        %v1003 = vld [vmem:[#allocation7] sm:$0xf]
        %v1004 = vld [vmem:[#allocation7 + $0x4] sm:$0xf]
        %v1005 = vld [vmem:[#allocation7 + $0x8] sm:$0xf]
        %v1006 = vld [vmem:[#allocation7 + $0xc] sm:$0xf]
        %v1007 = vld [vmem:[#allocation7 + $0x10] sm:$0xf]
        %v1008 = vld [vmem:[#allocation7 + $0x14] sm:$0xf]
        %v1009 = vld [vmem:[#allocation7 + $0x18] sm:$0xf]
        %v1010 = vld [vmem:[#allocation7 + $0x1c] sm:$0xf]
        %v1011 = vld [vmem:[#allocation7 + $0x20] sm:$0xf]
        %v1012 = vld [vmem:[#allocation7 + $0x24] sm:$0xf]
        %v1013 = vld [vmem:[#allocation7 + $0x28] sm:$0xf]
        %v1014 = vld [vmem:[#allocation7 + $0x2c] sm:$0xf]
        %v1015 = vld [vmem:[#allocation7 + $0x30] sm:$0xf]
        %v1016 = vld [vmem:[#allocation7 + $0x34] sm:$0xf]
        %v1017 = vld [vmem:[#allocation7 + $0x38] sm:$0xf]
        %v1018 = vld [vmem:[#allocation7 + $0x3c] sm:$0xf]
        %v1035 = vunpack.c.l.b16 %v1003
        %v1036 = vunpack.c.l.b16 %v1004
        %v1037 = vunpack.c.l.b16 %v1005
        %v1038 = vunpack.c.l.b16 %v1006
        %v1039 = vunpack.c.l.b16 %v1007
        %v1040 = vunpack.c.l.b16 %v1008
        %v1041 = vunpack.c.l.b16 %v1009
        %v1042 = vunpack.c.l.b16 %v1010
        %v1043 = vunpack.c.l.b16 %v1011
        %v1044 = vunpack.c.l.b16 %v1012
        %v1045 = vunpack.c.l.b16 %v1013
        %v1046 = vunpack.c.l.b16 %v1014
        %v1047 = vunpack.c.l.b16 %v1015
        %v1048 = vunpack.c.l.b16 %v1016
        %v1049 = vunpack.c.l.b16 %v1017
        %v1050 = vunpack.c.l.b16 %v1018
        %v1051 = vpack.c.b16 %v1036, %v1035
        %v1052 = vpack.c.b16 %v1038, %v1037
        %v1053 = vpack.c.b16 %v1040, %v1039
        %v1054 = vpack.c.b16 %v1042, %v1041
        %v1055 = vpack.c.b16 %v1044, %v1043
        %v1056 = vpack.c.b16 %v1046, %v1045
        %v1057 = vpack.c.b16 %v1048, %v1047
        %v1058 = vpack.c.b16 %v1050, %v1049
        %1067 = vmatprep.subr.bf16.mxu0 0
        %1068 = vmatpush1.bf16.msra.mxu0 %v1051
        %1069 = vmatprep.subr.bf16.mxu0 0
        %1070 = vmatpush1.bf16.msra.mxu0 %v1052
        %1071 = vmatprep.subr.bf16.mxu0 0
        %1072 = vmatpush1.bf16.msra.mxu0 %v1053
        %1073 = vmatprep.subr.bf16.mxu0 0
        %1074 = vmatpush1.bf16.msra.mxu0 %v1054
        %1075 = vmatprep.subr.bf16.mxu0 0
        %1076 = vmatpush1.bf16.msra.mxu0 %v1055
        %1077 = vmatprep.subr.bf16.mxu0 0
        %1078 = vmatpush1.bf16.msra.mxu0 %v1056
        %1079 = vmatprep.subr.bf16.mxu0 0
        %1080 = vmatpush1.bf16.msra.mxu0 %v1057
        %1081 = vmatprep.subr.bf16.mxu0 0
        %1082 = vmatpush1.bf16.msra.mxu0 %v1058
        %1083 = vmatprep.subr.bf16.mxu0 0
        %1084 = vmatpush1.bf16.msra.mxu0 0
        %1085 = vmatprep.subr.bf16.mxu0 0
        %1086 = vmatpush1.bf16.msra.mxu0 0
        %1087 = vmatprep.subr.bf16.mxu0 0
        %1088 = vmatpush1.bf16.msra.mxu0 0
        %1089 = vmatprep.subr.bf16.mxu0 0
        %1090 = vmatpush1.bf16.msra.mxu0 0
        %1091 = vmatprep.subr.bf16.mxu0 0
        %1092 = vmatpush1.bf16.msra.mxu0 0
        %1093 = vmatprep.subr.bf16.mxu0 0
        %1094 = vmatpush1.bf16.msra.mxu0 0
        %1095 = vmatprep.subr.bf16.mxu0 0
        %1096 = vmatpush1.bf16.msra.mxu0 0
        %1097 = vmatprep.subr.bf16.mxu0 0
        %1098 = vmatpush1.bf16.msra.mxu0 0
        %1099 = vmatprep.mubr.bf16.mxu0 0
        %1100 = vmatmul.mubr.bf16.gmra.mrb[0].mxu0 %v983
        %v1101 = vpop.f32.mrb[0].mxu0
        %v1102 = vadd.f32 0.0, %v1101
        %v1103 = vpop.f32.mrb[0].mxu0
        %v1104 = vpop.f32.mrb[0].mxu0
        %v1105 = vadd.f32 0.0, %v1104
        %v1106 = vpop.f32.mrb[0].mxu0
        %1107 = vdwg.mxu0
        %v1108 = vmul.f32 %v702, %v1102
        %v1109 = vmul.f32 %v707, %v1105
        %v1126 = vunpack.c.l.b16 %v987
        %v1127 = vunpack.c.l.b16 %v988
        %v1128 = vunpack.c.l.b16 %v989
        %v1129 = vunpack.c.l.b16 %v990
        %v1130 = vunpack.c.l.b16 %v991
        %v1131 = vunpack.c.l.b16 %v992
        %v1132 = vunpack.c.l.b16 %v993
        %v1133 = vunpack.c.l.b16 %v994
        %v1134 = vunpack.c.l.b16 %v995
        %v1135 = vunpack.c.l.b16 %v996
        %v1136 = vunpack.c.l.b16 %v997
        %v1137 = vunpack.c.l.b16 %v998
        %v1138 = vunpack.c.l.b16 %v999
        %v1139 = vunpack.c.l.b16 %v1000
        %v1140 = vunpack.c.l.b16 %v1001
        %v1141 = vunpack.c.l.b16 %v1002
        %v1142 = vpack.c.b16 %v1127, %v1126
        %v1143 = vpack.c.b16 %v1129, %v1128
        %v1144 = vpack.c.b16 %v1131, %v1130
        %v1145 = vpack.c.b16 %v1133, %v1132
        %v1146 = vpack.c.b16 %v1135, %v1134
        %v1147 = vpack.c.b16 %v1137, %v1136
        %v1148 = vpack.c.b16 %v1139, %v1138
        %v1149 = vpack.c.b16 %v1141, %v1140
        %1158 = vmatprep.subr.bf16.mxu0 0
        %1159 = vmatpush1.bf16.msra.mxu0 %v1142
        %1160 = vmatprep.subr.bf16.mxu0 0
        %1161 = vmatpush1.bf16.msra.mxu0 %v1143
        %1162 = vmatprep.subr.bf16.mxu0 0
        %1163 = vmatpush1.bf16.msra.mxu0 %v1144
        %1164 = vmatprep.subr.bf16.mxu0 0
        %1165 = vmatpush1.bf16.msra.mxu0 %v1145
        %1166 = vmatprep.subr.bf16.mxu0 0
        %1167 = vmatpush1.bf16.msra.mxu0 %v1146
        %1168 = vmatprep.subr.bf16.mxu0 0
        %1169 = vmatpush1.bf16.msra.mxu0 %v1147
        %1170 = vmatprep.subr.bf16.mxu0 0
        %1171 = vmatpush1.bf16.msra.mxu0 %v1148
        %1172 = vmatprep.subr.bf16.mxu0 0
        %1173 = vmatpush1.bf16.msra.mxu0 %v1149
        %1174 = vmatprep.subr.bf16.mxu0 0
        %1175 = vmatpush1.bf16.msra.mxu0 0
        %1176 = vmatprep.subr.bf16.mxu0 0
        %1177 = vmatpush1.bf16.msra.mxu0 0
        %1178 = vmatprep.subr.bf16.mxu0 0
        %1179 = vmatpush1.bf16.msra.mxu0 0
        %1180 = vmatprep.subr.bf16.mxu0 0
        %1181 = vmatpush1.bf16.msra.mxu0 0
        %1182 = vmatprep.subr.bf16.mxu0 0
        %1183 = vmatpush1.bf16.msra.mxu0 0
        %1184 = vmatprep.subr.bf16.mxu0 0
        %1185 = vmatpush1.bf16.msra.mxu0 0
        %1186 = vmatprep.subr.bf16.mxu0 0
        %1187 = vmatpush1.bf16.msra.mxu0 0
        %1188 = vmatprep.subr.bf16.mxu0 0
        %1189 = vmatpush1.bf16.msra.mxu0 0
        %1190 = vmatprep.mubr.bf16.mxu0 0
        %1191 = vmatmul.mubr.bf16.gmra.mrb[0].mxu0 %v978
        %v1192 = vpop.f32.mrb[0].mxu0
        %v1193 = vadd.f32 %v1108, %v1192
        %v1194 = vpop.f32.mrb[0].mxu0
        %v1195 = vpop.f32.mrb[0].mxu0
        %v1196 = vadd.f32 %v1109, %v1195
        %v1197 = vpop.f32.mrb[0].mxu0
        %1198 = vdwg.mxu0
        %v1199 = vld [vmem:[#allocation7 + $0x80] sm:$0xf]
        %v1200 = vld [vmem:[#allocation7 + $0x84] sm:$0xf]
        %v1201 = vld [vmem:[#allocation7 + $0x88] sm:$0xf]
        %v1202 = vld [vmem:[#allocation7 + $0x8c] sm:$0xf]
        %v1203 = vld [vmem:[#allocation7 + $0x90] sm:$0xf]
        %v1204 = vld [vmem:[#allocation7 + $0x94] sm:$0xf]
        %v1205 = vld [vmem:[#allocation7 + $0x98] sm:$0xf]
        %v1206 = vld [vmem:[#allocation7 + $0x9c] sm:$0xf]
        %v1207 = vld [vmem:[#allocation7 + $0xa0] sm:$0xf]
        %v1208 = vld [vmem:[#allocation7 + $0xa4] sm:$0xf]
        %v1209 = vld [vmem:[#allocation7 + $0xa8] sm:$0xf]
        %v1210 = vld [vmem:[#allocation7 + $0xac] sm:$0xf]
        %v1211 = vld [vmem:[#allocation7 + $0xb0] sm:$0xf]
        %v1212 = vld [vmem:[#allocation7 + $0xb4] sm:$0xf]
        %v1213 = vld [vmem:[#allocation7 + $0xb8] sm:$0xf]
        %v1214 = vld [vmem:[#allocation7 + $0xbc] sm:$0xf]
        %v1231 = vunpack.c.l.b16 %v1199
        %v1232 = vunpack.c.l.b16 %v1200
        %v1233 = vunpack.c.l.b16 %v1201
        %v1234 = vunpack.c.l.b16 %v1202
        %v1235 = vunpack.c.l.b16 %v1203
        %v1236 = vunpack.c.l.b16 %v1204
        %v1237 = vunpack.c.l.b16 %v1205
        %v1238 = vunpack.c.l.b16 %v1206
        %v1239 = vunpack.c.l.b16 %v1207
        %v1240 = vunpack.c.l.b16 %v1208
        %v1241 = vunpack.c.l.b16 %v1209
        %v1242 = vunpack.c.l.b16 %v1210
        %v1243 = vunpack.c.l.b16 %v1211
        %v1244 = vunpack.c.l.b16 %v1212
        %v1245 = vunpack.c.l.b16 %v1213
        %v1246 = vunpack.c.l.b16 %v1214
        %v1247 = vpack.c.b16 %v1232, %v1231
        %v1248 = vpack.c.b16 %v1234, %v1233
        %v1249 = vpack.c.b16 %v1236, %v1235
        %v1250 = vpack.c.b16 %v1238, %v1237
        %v1251 = vpack.c.b16 %v1240, %v1239
        %v1252 = vpack.c.b16 %v1242, %v1241
        %v1253 = vpack.c.b16 %v1244, %v1243
        %v1254 = vpack.c.b16 %v1246, %v1245
        %1263 = vmatprep.subr.bf16.mxu0 0
        %1264 = vmatpush1.bf16.msra.mxu0 %v1247
        %1265 = vmatprep.subr.bf16.mxu0 0
        %1266 = vmatpush1.bf16.msra.mxu0 %v1248
        %1267 = vmatprep.subr.bf16.mxu0 0
        %1268 = vmatpush1.bf16.msra.mxu0 %v1249
        %1269 = vmatprep.subr.bf16.mxu0 0
        %1270 = vmatpush1.bf16.msra.mxu0 %v1250
        %1271 = vmatprep.subr.bf16.mxu0 0
        %1272 = vmatpush1.bf16.msra.mxu0 %v1251
        %1273 = vmatprep.subr.bf16.mxu0 0
        %1274 = vmatpush1.bf16.msra.mxu0 %v1252
        %1275 = vmatprep.subr.bf16.mxu0 0
        %1276 = vmatpush1.bf16.msra.mxu0 %v1253
        %1277 = vmatprep.subr.bf16.mxu0 0
        %1278 = vmatpush1.bf16.msra.mxu0 %v1254
        %1279 = vmatprep.subr.bf16.mxu0 0
        %1280 = vmatpush1.bf16.msra.mxu0 0
        %1281 = vmatprep.subr.bf16.mxu0 0
        %1282 = vmatpush1.bf16.msra.mxu0 0
        %1283 = vmatprep.subr.bf16.mxu0 0
        %1284 = vmatpush1.bf16.msra.mxu0 0
        %1285 = vmatprep.subr.bf16.mxu0 0
        %1286 = vmatpush1.bf16.msra.mxu0 0
        %1287 = vmatprep.subr.bf16.mxu0 0
        %1288 = vmatpush1.bf16.msra.mxu0 0
        %1289 = vmatprep.subr.bf16.mxu0 0
        %1290 = vmatpush1.bf16.msra.mxu0 0
        %1291 = vmatprep.subr.bf16.mxu0 0
        %1292 = vmatpush1.bf16.msra.mxu0 0
        %1293 = vmatprep.subr.bf16.mxu0 0
        %1294 = vmatpush1.bf16.msra.mxu0 0
        %1295 = vmatprep.mubr.bf16.mxu0 0
        %1296 = vmatmul.mubr.bf16.gmra.mrb[0].mxu0 %v986
        %v1297 = vpop.f32.mrb[0].mxu0
        %v1298 = vadd.f32 0.0, %v1297
        %v1299 = vpop.f32.mrb[0].mxu0
        %v1300 = vpop.f32.mrb[0].mxu0
        %v1301 = vadd.f32 0.0, %v1300
        %v1302 = vpop.f32.mrb[0].mxu0
        %1303 = vdwg.mxu0
        %v1304 = vmul.f32 %v914, %v1298
        %v1305 = vmul.f32 %v919, %v1301
        %v1306 = vadd.f32 %v1193, %v1304
        %v1307 = vadd.f32 %v1196, %v1305
        %v1308 = vld [vmem:[%s8] sm:$0x1]
        %v1310 = vlaneseq
        %v1311 = vshrl.u32 %v1310, 7
        %v1312 = vsub.s32 0, %v1311
        %v1313 = vrot.slane %v1308, %v1312
        %v1315 = vadd.f32 %v1306, %v1313
        %v1316 = vadd.f32 %v1307, %v1313
        %v1317 = vmax.f32 %v1315, 0.0
        %v1318 = vmax.f32 %v1316, 0.0
        %1319 = vadd.xlane.f32.xlu0 %v1317
        %v1320 = vpop.xlane.xlu0 %1319
        %1321 = vadd.xlane.f32.xlu0 %v1318
        %v1322 = vpop.xlane.xlu0 %1321
        %v1323 = vmul.f32 %v1320, 0.03125
        %v1324 = vmul.f32 %v1322, 0.03125
        %v1325 = vsub.f32 %v1317, %v1323
        %v1326 = vsub.f32 %v1318, %v1324
        %v1327 = vsel %vm567, %v1325, 0.0
        %v1328 = vsel %vm567, %v1326, 0.0
        %v1329 = vmul.f32 %v1327, %v1327
        %v1330 = vmul.f32 %v1328, %v1328
        %1331 = vadd.xlane.f32.xlu0 %v1329
        %v1332 = vpop.xlane.xlu0 %1331
        %1333 = vadd.xlane.f32.xlu0 %v1330
        %v1334 = vpop.xlane.xlu0 %1333
        %v1335 = vmul.f32 %v1332, 0.03125
        %v1336 = vmul.f32 %v1334, 0.03125
        %v1337 = vadd.f32 %v1335, 1e-05
        %v1338 = vadd.f32 %v1336, 1e-05
        %v1339 = vrsqrt.pop %v1337
        %v1340 = vrsqrt.pop %v1338
        %v1341 = vmul.f32 %v1327, %v1339
        %v1342 = vmul.f32 %v1328, %v1340
        %v1343 = vld [vmem:[%s9] sm:$0x1]
        %v1345 = vlaneseq
        %v1346 = vshrl.u32 %v1345, 7
        %v1347 = vsub.s32 0, %v1346
        %v1348 = vrot.slane %v1343, %v1347
        %v1350 = vmul.f32 %v1341, %v1348
        %v1351 = vmul.f32 %v1342, %v1348
        %v1352 = vld [vmem:[%s10] sm:$0x1]
        %v1354 = vlaneseq
        %v1355 = vshrl.u32 %v1354, 7
        %v1356 = vsub.s32 0, %v1355
        %v1357 = vrot.slane %v1352, %v1356
        %v1359 = vadd.f32 %v1350, %v1357
        %v1360 = vadd.f32 %v1351, %v1357
        %v1361 = vld [vmem:[%s11] sm:$0x1]
        %v1363 = vlaneseq
        %v1364 = vshrl.u32 %v1363, 7
        %v1365 = vsub.s32 0, %v1364
        %v1366 = vrot.slane %v1361, %v1365
        %v1368 = vmul.f32 %v1359, %v1366
        %v1369 = vmul.f32 %v1360, %v1366
        %1370 = vadd.xlane.f32.xlu0 %v1368
        %v1371 = vpop.xlane.xlu0 %1370
        %1372 = vadd.xlane.f32.xlu0 %v1369
        %v1373 = vpop.xlane.xlu0 %1372
        %v1374 = vld [vmem:[#allocation3] sm:$0x1]
        %v1376 = vlaneseq
        %v1377 = vshrl.u32 %v1376, 7
        %v1378 = vsub.s32 0, %v1377
        %v1379 = vrot.slane %v1374, %v1378
        %v1381 = vadd.f32 %v1371, %v1379
        %v1382 = vadd.f32 %v1373, %v1379
        %v1383 = vmul.f32 %v1381, 1.442695
        %v1384 = vpow.pop %v1383
        %v1385 = vmul.f32 %v1382, 1.442695
        %v1386 = vpow.pop %v1385
        %v1387 = vadd.f32 %v1384, 1.0
        %v1388 = vlog2.pop %v1387
        %v1389 = vmul.f32 %v1388, 0.6931472
        %v1390 = vmul.f32 -0.5, %v1384
        %v1391 = vadd.f32 %v1390, 1.0
        %v1392 = vmul.f32 %v1391, %v1384
        %v1393 = vand.u32 2147483647, %v1384
        %vm1394 = vcmp.lt.f32.partialorder %v1393, 0.0004427343
        %v1395 = vsel %vm1394, %v1392, %v1389
        %v1396 = vadd.f32 %v1386, 1.0
        %v1397 = vlog2.pop %v1396
        %v1398 = vmul.f32 %v1397, 0.6931472
        %v1399 = vmul.f32 -0.5, %v1386
        %v1400 = vadd.f32 %v1399, 1.0
        %v1401 = vmul.f32 %v1400, %v1386
        %v1402 = vand.u32 2147483647, %v1386
        %vm1403 = vcmp.lt.f32.partialorder %v1402, 0.0004427343
        %v1404 = vsel %vm1403, %v1401, %v1398
        %v1405 = vmul.f32 %v1395, 44.681107
        %v1406 = vmul.f32 %v1404, 44.681107
        %v1407 = vceil.f32 %v1405
        %v1408 = vceil.f32 %v1406
        %v1409 = vmax.f32 %v1407, 0.0
        %v1410 = vmax.f32 %v1408, 0.0
        %v1411 = vmin.f32 %v1409, 255.0
        %v1412 = vmin.f32 %v1410, 255.0
        %v1413 = vcvt.f32.s32.to.zero.pseudo %v1411
        %v1414 = vcvt.f32.s32.to.zero.pseudo %v1412
        %v1415 = vadd.s32 %v566, 128
        %1416 = vset.pattern.permute.xlu0 0
        %1417 = vperm.xlu0 %1416, %v1413
        %v1418 = vpop.permute.xlu0 %1417
        %1419 = vset.pattern.permute.xlu0 0
        %1420 = vperm.xlu0 %1419, %v1414
        %v1421 = vpop.permute.xlu0 %1420
        %vm1422 = vcmp.eq.s32.totalorder %v566, %v1418
        %vm1423 = vcmp.eq.s32.totalorder %v1415, %v1418
        %vm1424 = vcmp.eq.s32.totalorder %v566, %v1421
        %vm1425 = vcmp.eq.s32.totalorder %v1415, %v1421
        %v1426 = vsel %vm1422, 1, 0
        %v1427 = vsel %vm1423, 1, 0
        %v1428 = vsel %vm1424, 1, 0
        %v1429 = vsel %vm1425, 1, 0
        %v1430 = vcvt.s32.f32 %v1426
        %v1431 = vcvt.s32.f32 %v1427
        %v1432 = vcvt.s32.f32 %v1428
        %v1433 = vcvt.s32.f32 %v1429
        %v1434 = vld [vmem:[#allocation9] sm:$0xff]
        %v1435 = vld [vmem:[#allocation9 + $0x8] sm:$0xff]
        %v1436 = vld [vmem:[#allocation9 + $0x10] sm:$0xff]
        %v1437 = vld [vmem:[#allocation9 + $0x18] sm:$0xff]
        %v1438 = vld [vmem:[#allocation9 + $0x20] sm:$0xff]
        %v1439 = vld [vmem:[#allocation9 + $0x28] sm:$0xff]
        %v1440 = vld [vmem:[#allocation9 + $0x30] sm:$0xff]
        %v1441 = vld [vmem:[#allocation9 + $0x38] sm:$0xff]
        %v1442 = vld [vmem:[#allocation9 + $0x40] sm:$0xff]
        %v1443 = vld [vmem:[#allocation9 + $0x48] sm:$0xff]
        %v1444 = vld [vmem:[#allocation9 + $0x50] sm:$0xff]
        %v1445 = vld [vmem:[#allocation9 + $0x58] sm:$0xff]
        %v1446 = vld [vmem:[#allocation9 + $0x60] sm:$0xff]
        %v1447 = vld [vmem:[#allocation9 + $0x68] sm:$0xff]
        %v1448 = vld [vmem:[#allocation9 + $0x70] sm:$0xff]
        %v1449 = vld [vmem:[#allocation9 + $0x78] sm:$0xff]
        %v1450 = vld [vmem:[#allocation9 + $0x80] sm:$0xff]
        %v1451 = vld [vmem:[#allocation9 + $0x88] sm:$0xff]
        %v1452 = vld [vmem:[#allocation9 + $0x90] sm:$0xff]
        %v1453 = vld [vmem:[#allocation9 + $0x98] sm:$0xff]
        %v1454 = vld [vmem:[#allocation9 + $0xa0] sm:$0xff]
        %v1455 = vld [vmem:[#allocation9 + $0xa8] sm:$0xff]
        %v1456 = vld [vmem:[#allocation9 + $0xb0] sm:$0xff]
        %v1457 = vld [vmem:[#allocation9 + $0xb8] sm:$0xff]
        %v1458 = vld [vmem:[#allocation9 + $0xc0] sm:$0xff]
        %v1459 = vld [vmem:[#allocation9 + $0xc8] sm:$0xff]
        %v1460 = vld [vmem:[#allocation9 + $0xd0] sm:$0xff]
        %v1461 = vld [vmem:[#allocation9 + $0xd8] sm:$0xff]
        %v1462 = vld [vmem:[#allocation9 + $0xe0] sm:$0xff]
        %v1463 = vld [vmem:[#allocation9 + $0xe8] sm:$0xff]
        %v1464 = vld [vmem:[#allocation9 + $0xf0] sm:$0xff]
        %v1465 = vld [vmem:[#allocation9 + $0xf8] sm:$0xff]
        %1466 = vmatprep.subr.mxu0 0.0
        %1467 = vmatpush1.msra.mxu0 %v1434
        %1468 = vmatprep.subr.mxu0 0.0
        %1469 = vmatpush1.msra.mxu0 %v1435
        %1470 = vmatprep.subr.mxu0 0.0
        %1471 = vmatpush1.msra.mxu0 %v1436
        %1472 = vmatprep.subr.mxu0 0.0
        %1473 = vmatpush1.msra.mxu0 %v1437
        %1474 = vmatprep.subr.mxu0 0.0
        %1475 = vmatpush1.msra.mxu0 %v1438
        %1476 = vmatprep.subr.mxu0 0.0
        %1477 = vmatpush1.msra.mxu0 %v1439
        %1478 = vmatprep.subr.mxu0 0.0
        %1479 = vmatpush1.msra.mxu0 %v1440
        %1480 = vmatprep.subr.mxu0 0.0
        %1481 = vmatpush1.msra.mxu0 %v1441
        %1482 = vmatprep.subr.mxu0 0.0
        %1483 = vmatpush1.msra.mxu0 %v1442
        %1484 = vmatprep.subr.mxu0 0.0
        %1485 = vmatpush1.msra.mxu0 %v1443
        %1486 = vmatprep.subr.mxu0 0.0
        %1487 = vmatpush1.msra.mxu0 %v1444
        %1488 = vmatprep.subr.mxu0 0.0
        %1489 = vmatpush1.msra.mxu0 %v1445
        %1490 = vmatprep.subr.mxu0 0.0
        %1491 = vmatpush1.msra.mxu0 %v1446
        %1492 = vmatprep.subr.mxu0 0.0
        %1493 = vmatpush1.msra.mxu0 %v1447
        %1494 = vmatprep.subr.mxu0 0.0
        %1495 = vmatpush1.msra.mxu0 %v1448
        %1496 = vmatprep.subr.mxu0 0.0
        %1497 = vmatpush1.msra.mxu0 %v1449
        %1498 = vmatprep.subr.mxu0 0.0
        %1499 = vmatpush1.msra.mxu0 %v1450
        %1500 = vmatprep.subr.mxu0 0.0
        %1501 = vmatpush1.msra.mxu0 %v1451
        %1502 = vmatprep.subr.mxu0 0.0
        %1503 = vmatpush1.msra.mxu0 %v1452
        %1504 = vmatprep.subr.mxu0 0.0
        %1505 = vmatpush1.msra.mxu0 %v1453
        %1506 = vmatprep.subr.mxu0 0.0
        %1507 = vmatpush1.msra.mxu0 %v1454
        %1508 = vmatprep.subr.mxu0 0.0
        %1509 = vmatpush1.msra.mxu0 %v1455
        %1510 = vmatprep.subr.mxu0 0.0
        %1511 = vmatpush1.msra.mxu0 %v1456
        %1512 = vmatprep.subr.mxu0 0.0
        %1513 = vmatpush1.msra.mxu0 %v1457
        %1514 = vmatprep.subr.mxu0 0.0
        %1515 = vmatpush1.msra.mxu0 %v1458
        %1516 = vmatprep.subr.mxu0 0.0
        %1517 = vmatpush1.msra.mxu0 %v1459
        %1518 = vmatprep.subr.mxu0 0.0
        %1519 = vmatpush1.msra.mxu0 %v1460
        %1520 = vmatprep.subr.mxu0 0.0
        %1521 = vmatpush1.msra.mxu0 %v1461
        %1522 = vmatprep.subr.mxu0 0.0
        %1523 = vmatpush1.msra.mxu0 %v1462
        %1524 = vmatprep.subr.mxu0 0.0
        %1525 = vmatpush1.msra.mxu0 %v1463
        %1526 = vmatprep.subr.mxu0 0.0
        %1527 = vmatpush1.msra.mxu0 %v1464
        %1528 = vmatprep.subr.mxu0 0.0
        %1529 = vmatpush1.msra.mxu0 %v1465
        %1530 = vmatprep.mubr.f32.mxu0 %v1431
        %1531 = vmatmul.mubr.f32.gmra.mrb[0].mxu0 %v1430
        %v1532 = vpop.f32.mrb[0].mxu0
        %v1533 = vadd.f32 0.0, %v1532
        %v1534 = vpop.f32.mrb[0].mxu0
        %1535 = vmatprep.mubr.f32.mxu0 %v1433
        %1536 = vmatmul.mubr.f32.gmra.mrb[0].mxu0 %v1432
        %v1537 = vpop.f32.mrb[0].mxu0
        %v1538 = vadd.f32 0.0, %v1537
        %v1539 = vpop.f32.mrb[0].mxu0
        %1540 = vdwg.mxu0
        %1541 = vst [vmem:[%s535] sm:$0xff] %v1533
        %1542 = vst [vmem:[%s535 + $0x8] sm:$0xff] %v1538
        %vm1543 = vcmask 7168
        %1544 = vst.msk [vmem:[%s554] sm:$0xff] %vm1543, %v1384
        %1545 = vst.msk [vmem:[%s554 + $0x8] sm:$0xff] %vm1543, %v1386
        %s1546 = sand.u32 %s341, 1
        %s1547 = scalar_lea.sflag [#allocation6], %s1546
        %s1548 = sand.u32 %s341, 1
        %s1549 = smul.addr %s1548, 16
        %s1550 = scalar_lea.vmem [#allocation10], %s1549
        %s1551 = smul.u32 2, %s34
        %p1552 = scmp.lt.s32.totalorder %s1551, 3
        %s1553 = scalar_select %p1552, %s1551, 3
        %s1554 = smul.addr %s1553, 8
        %s1555 = scalar_lea.vmem %s15, %s1554
        // Predicated region
        $region89: #{tpu_custom_call.1} parent=75 // pred_check
          %p1556 = pneg %p351
        $region90: #{tpu_custom_call.1} parent=75 // pred_check_branch
          %1558 = sbr.rel (%p1556) target = $region92
        $region91: #{tpu_custom_call.1} parent=75 // pred_region
          %s1559 = smul.u32 2, %s34
          %s1561 = ssub.s32 256, 256
          %1562 = vsyncadd %s1547, %s1561
          %s1563 = smul.addr %s1559, 128
          %s1564 = scalar_lea.hbm %s14, %s1563
          %s1565 = sshll.u32 %s1550, 4
          %s1566 = int_to_ptr.vmem [resolvable:$true] %s1565
          %1571 = dma.vmem_to_hbm [thread:$0]  %s1566, 256, %s1564, %s1547, 128, 128, 8
        $region92: #{tpu_custom_call.1} parent=75 // pred_fallthru
          _
        // Predicated region
        $region93: #{tpu_custom_call.1} parent=75 // pred_check
          %p1572 = pneg %p377
        $region94: #{tpu_custom_call.1} parent=75 // pred_check_branch
          %1574 = sbr.rel (%p1572) target = $region96
        $region95: #{tpu_custom_call.1} parent=75 // pred_region
          %s1575 = smul.u32 2, %s34
        $region96: #{tpu_custom_call.1} parent=75 // pred_fallthru
          _
      $region76: #{tpu_custom_call.1} parent=5 // pred_fallthru
        _
      %p1576 = scmp.le.s32.totalorder 2, %s29
      // Predicated region
      $region97: #{tpu_custom_call.1} parent=5 // pred_check
        %p1577 = pneg %p1576
      $region98: #{tpu_custom_call.1} parent=5 // pred_check_branch
        %1579 = sbr.rel (%p1577) target = $region100
      $region99: #{tpu_custom_call.1} parent=5 // pred_region
        %s1580 = ssub.s32 %s29, 2
        // Predicated region
        $region101: #{tpu_custom_call.1} parent=99 // pred_check
          %p1581 = pneg %p357
        $region102: #{tpu_custom_call.1} parent=99 // pred_check_branch
          %1583 = sbr.rel (%p1581) target = $region104
        $region103: #{tpu_custom_call.1} parent=99 // pred_region
          %s1584 = sand.u32 %s342, 1
          %s1585 = scalar_lea.sflag [#allocation6], %s1584
          %s1586 = sand.u32 %s342, 1
          %s1587 = smul.addr %s1586, 16
          %s1588 = scalar_lea.vmem [#allocation10], %s1587
          %1589 = dma.done %s1585, 256
        $region104: #{tpu_custom_call.1} parent=99 // pred_fallthru
          _
        // Predicated region
        $region105: #{tpu_custom_call.1} parent=99 // pred_check
          %p1590 = pneg %p383
        $region106: #{tpu_custom_call.1} parent=99 // pred_check_branch
          %1592 = sbr.rel (%p1590) target = $region108
        $region107: #{tpu_custom_call.1} parent=99 // pred_region
          %s1593 = smul.u32 2, %s35
          %p1594 = scmp.lt.s32.totalorder %s1593, 3
          %s1595 = scalar_select %p1594, %s1593, 3
          %s1596 = smul.addr %s1595, 8
          %s1597 = scalar_lea.vmem %s15, %s1596
        $region108: #{tpu_custom_call.1} parent=99 // pred_fallthru
          _
      $region100: #{tpu_custom_call.1} parent=5 // pred_fallthru
        _
    $region6: #{tpu_custom_call.1} parent=1 // loop_footer
      %s33 = sadd.s32 1, %s29
    $region7: #{tpu_custom_call.1} parent=1 // loop_footer_branch
      %28 = sbr.rel target = $region3
    $region8: #{tpu_custom_call.1} parent=1 // loop_exit
      _
    %1598 = vsyncpa [#allocation5], 1
    %s1599 = scalar_lea.sflag [#allocation5], 1
    %1600 = vsyncpa %s1599, 1
    %1601 = vsyncpa [#allocation8], 1
    %1602 = vsyncpa [#allocation6], 1
    %s1603 = scalar_lea.sflag [#allocation6], 1
    %1604 = vsyncpa %s1603, 1

</llo_original>
